<compile_context>
chip_gen: v7x
topology: tpu7x:2x2x1
jax: 0.10.0
libtpu: 0.0.40
codegen_flags: <defaults>
</compile_context>

<pallas_src>
import jax
import jax.numpy as jnp
from jax.experimental import pallas as pl
from jax.experimental.pallas import tpu as pltpu


def _round_up(x, m):
    return (x + m - 1) // m * m


def _cdiv(a, b):
    return (a + b - 1) // b


def _fold_bn(w, b, gamma, beta, mean, var, eps=1e-5):
    """Fold inference-mode BatchNorm into a 1x1 conv: BN(Wx+b) == W'x+b'."""
    scale = gamma / jnp.sqrt(var + eps)              # (C_out,)
    return w * scale[:, None], (b - mean) * scale + beta


def _make_kernel(b_t, mxu_dtype):
    """Kernel over one (B_t, C, tile_m) activation block (lane-dense spatial)."""

    def kernel(xa_ref, xb_ref, wa_ref, wb_ref, b1_ref, w2_ref, b2_ref, o_ref):
        wa = wa_ref[...]                              # (C, C), BN folded
        wb = wb_ref[...]
        w2 = w2_ref[...]
        b1 = b1_ref[...]                              # (C, 1) f32
        b2 = b2_ref[...]
        for bi in range(b_t):                         # trace-time unrolled rows
            xb = xb_ref[bi]                           # (C, tile_m), for the gate
            xa = xa_ref[bi]
            # Stage 1: two folded 1x1 convs (+ pre-summed BN bias), ReLU.
            h = (jnp.dot(wa, xa.astype(mxu_dtype),
                         preferred_element_type=jnp.float32)
                 + jnp.dot(wb, xb.astype(mxu_dtype),
                           preferred_element_type=jnp.float32)
                 + b1)
            h = jnp.maximum(h, 0.0)
            # Stage 2: folded 1x1 conv + BN, sigmoid gate (exp + rcp on EUP).
            z = jnp.dot(w2, h.astype(mxu_dtype),
                        preferred_element_type=jnp.float32) + b2
            g = pl.reciprocal(1.0 + jnp.exp(-z), approx=True)
            o_ref[bi] = (g * xb.astype(jnp.float32)).astype(o_ref.dtype)

    return kernel


def _tpu_budget():
    """Return (physical VMEM bytes, per-tensor per-step block byte target)."""
    try:
        vmem_cap = int(pltpu.get_tpu_info().vmem_capacity_bytes)
    except Exception:
        vmem_cap = 64 * 2 ** 20                       # conservative (v7x per-TC)
    # v7x pairs the smaller 64 MiB VMEM with ~3.2 TB/s HBM -> larger blocks
    # are needed to amortize the ~0.35 us per-grid-step overhead.
    target = 4 * 2 ** 20 if vmem_cap <= 64 * 2 ** 20 else 2 * 2 ** 20
    return vmem_cap, target


def _choose_tiles(N, C, HW, elem_bytes, target_blk, vmem_cap):
    """Pick (B_t, tile_m): multi-MiB lane-dense blocks that fit VMEM."""
    hw_ceil = _round_up(HW, 128)
    # 1) grow the lane tile toward full HW
    want_m = _round_up(_cdiv(target_blk, max(C * elem_bytes, 1)), 128)
    tile_m = max(128, min(hw_ceil, want_m))
    # 2) amortize further across batch rows
    row_bytes = C * tile_m * elem_bytes
    b_t = max(1, min(N, target_blk // max(row_bytes, 1), 16))

    # 3) ~9 live f32 copies of the block (double-buffered xa/xb/out + in-kernel
    #    temporaries) must fit in half of physical VMEM.
    def live(bt, tm):
        return 9 * bt * C * tm * 4

    budget = vmem_cap // 2
    while b_t > 1 and live(b_t, tile_m) > budget:
        b_t -= 1
    while tile_m > 128 and live(b_t, tile_m) > budget:
        tile_m = max(128, _round_up(tile_m // 2, 128))
    # 4) keep >= 2 grid steps when possible so both v7x TensorCores get work.
    if _cdiv(N, b_t) * _cdiv(HW, tile_m) < 2:
        if N >= 2:
            b_t = _cdiv(N, 2)
        elif HW > 128:
            tile_m = max(128, _round_up(_cdiv(HW, 2), 128))
    return b_t, tile_m


def attention_gate(x_a, x_b, params, *, eps=1e-5):
    """x_a, x_b: NCHW tensors of identical shape (N, C, H, W); f32 or bf16."""
    N, C, H, W = x_a.shape
    HW = H * W

    # NCHW -> (N, C, H*W): pure reshape, spatial sits on the 128-lane axis.
    xa3 = x_a.reshape(N, C, HW)
    xb3 = x_b.reshape(N, C, HW)

    wa, ba = _fold_bn(params["wa"], params["ba"], *params["bn_a"], eps=eps)
    wb, bb = _fold_bn(params["wb"], params["bb"], *params["bn_b"], eps=eps)
    w2, b2 = _fold_bn(params["w2"], params["b2"], *params["bn_2"], eps=eps)

    # Small C => HBM-bound: f32 MXU operands cost nothing and keep f32 parity.
    # Large C => bf16 operands (f32 accumulation) for MXU throughput.
    mxu_dtype = jnp.bfloat16 if C > 128 else jnp.float32
    wa = wa.astype(mxu_dtype)
    wb = wb.astype(mxu_dtype)
    w2 = w2.astype(mxu_dtype)
    b1 = (ba + bb).reshape(C, 1).astype(jnp.float32)   # pre-summed stage-1 bias
    b2 = b2.reshape(C, 1).astype(jnp.float32)

    vmem_cap, target_blk = _tpu_budget()
    elem = jnp.dtype(x_a.dtype).itemsize
    b_t, tile_m = _choose_tiles(N, C, HW, elem, target_blk, vmem_cap)
    grid = (_cdiv(N, b_t), _cdiv(HW, tile_m))

    # VMEM accounting: double-buffered xa/xb/out blocks + ~3 blocks of f32
    # in-kernel temporaries (h, z/g, casts) + weights/biases.
    blk = b_t * C * tile_m * 4
    w_bytes = 3 * C * C * jnp.dtype(mxu_dtype).itemsize + 2 * C * 4
    vmem_est = 9 * blk + 2 * w_bytes
    vmem_limit = int(min(max(2 * vmem_est, 32 * 2 ** 20), int(0.75 * vmem_cap)))

    kernel = _make_kernel(b_t, mxu_dtype)
    row_spec = pl.BlockSpec((b_t, C, tile_m), lambda n, i: (n, 0, i))
    out_shape = jax.ShapeDtypeStruct((N, C, HW), x_b.dtype)
    cparams = pltpu.CompilerParams(
        dimension_semantics=("parallel", "parallel"),
        vmem_limit_bytes=vmem_limit,
    )

    def call(single_buffer_weights):
        if single_buffer_weights:
            # Constant index_map -> one resident copy suffices; halves weight
            # VMEM (matters against v7x's 64 MiB per-TC budget).
            w_spec = pl.BlockSpec((C, C), lambda n, i: (0, 0),
                                  pipeline_mode=pl.Buffered(1))
            b_spec = pl.BlockSpec((C, 1), lambda n, i: (0, 0),
                                  pipeline_mode=pl.Buffered(1))
        else:
            w_spec = pl.BlockSpec((C, C), lambda n, i: (0, 0))
            b_spec = pl.BlockSpec((C, 1), lambda n, i: (0, 0))
        return pl.pallas_call(
            kernel,
            out_shape=out_shape,
            grid_spec=pltpu.PrefetchScalarGridSpec(
                num_scalar_prefetch=0,
                grid=grid,
                in_specs=[row_spec, row_spec,
                          w_spec, w_spec, b_spec,
                          w_spec, b_spec],
                out_specs=row_spec,
            ),
            compiler_params=cparams,
        )(xa3, xb3, wa, wb, b1, w2, b2)

    try:
        out3 = call(True)
    except Exception:
        # Fallback if this JAX build rejects pipeline_mode=pl.Buffered(1):
        # default double-buffered weight blocks (identical semantics).
        out3 = call(False)

    return out3.reshape(N, C, H, W)


def _reference(x_a, x_b, params, eps=1e-5):
    """Pure-JAX f32 reference (NCHW, same folded-BN inference semantics)."""
    wa, ba = _fold_bn(params["wa"], params["ba"], *params["bn_a"], eps=eps)
    wb, bb = _fold_bn(params["wb"], params["bb"], *params["bn_b"], eps=eps)
    w2, b2 = _fold_bn(params["w2"], params["b2"], *params["bn_2"], eps=eps)
    h = (jnp.einsum("oc,nchw->nohw", wa, x_a) + ba[None, :, None, None]
         + jnp.einsum("oc,nchw->nohw", wb, x_b) + bb[None, :, None, None])
    h = jnp.maximum(h, 0.0)
    g = jax.nn.sigmoid(jnp.einsum("oc,nchw->nohw", w2, h)
                       + b2[None, :, None, None])
    return g * x_b


def init_params(key, C):
    ks = jax.random.split(key, 6)

    def conv_w(k):
        # nn.Conv2d 1x1 weight (C_out, C_in, 1, 1) stored as (C_out, C_in).
        return jax.random.normal(k, (C, C), jnp.float32) * 0.1

    def bn(k):
        gamma = 1.0 + 0.05 * jax.random.normal(k, (C,), jnp.float32)
        beta = 0.02 * jnp.arange(C, dtype=jnp.float32)
        mean = 0.01 * jnp.arange(C, dtype=jnp.float32)
        var = jnp.ones((C,), jnp.float32) * 0.9
        return (gamma, beta, mean, var)

    return {
        "wa": conv_w(ks[0]), "ba": 0.01 * jnp.arange(C, dtype=jnp.float32),
        "wb": conv_w(ks[1]), "bb": -0.01 * jnp.arange(C, dtype=jnp.float32),
        "w2": conv_w(ks[2]), "b2": 0.03 * jnp.ones((C,), jnp.float32),
        "bn_a": bn(ks[3]), "bn_b": bn(ks[4]), "bn_2": bn(ks[5]),
    }


if __name__ == "__main__":
    key = jax.random.PRNGKey(0)
    k1, k2, k3 = jax.random.split(key, 3)

    N, C, H, W = 2, 4, 16, 16            # HW = 256 -> grid (2, 1), B_t = 1
    x_a = jax.random.normal(k1, (N, C, H, W), jnp.float32)
    x_b = jax.random.normal(k2, (N, C, H, W), jnp.float32)
    params = init_params(k3, C)

    out = jax.block_until_ready(attention_gate(x_a, x_b, params))
    ref = _reference(x_a, x_b, params)

    assert out.shape == (N, C, H, W)
    # f32 MXU path at this C; tolerance covers the approx-EUP sigmoid (and the
    # bf16 path used for large C).
    assert jnp.allclose(out, ref, atol=2e-2, rtol=2e-2), "mismatch vs reference"

    print("KERNEL_OK")
</pallas_src>

<mosaic_0001>
module attributes {stable_mosaic.version = 11 : i64} {
  func.func @kernel(%arg0: i32, %arg1: i32, %arg2: memref<1x4x256xf32, #tpu.memory_space<vmem>>, %arg3: memref<1x4x256xf32, #tpu.memory_space<vmem>>, %arg4: memref<4x4xf32, #tpu.memory_space<vmem>>, %arg5: memref<4x4xf32, #tpu.memory_space<vmem>>, %arg6: memref<4x1xf32, #tpu.memory_space<vmem>>, %arg7: memref<4x4xf32, #tpu.memory_space<vmem>>, %arg8: memref<4x1xf32, #tpu.memory_space<vmem>>, %arg9: memref<1x4x256xf32, #tpu.memory_space<vmem>>) attributes {dimension_semantics = [#tpu.dimension_semantics<parallel>, #tpu.dimension_semantics<parallel>], iteration_bounds = array<i64: 2, 1>, scalar_prefetch = 0 : i64, scratch_operands = 0 : i64, tpu.core_type = #tpu.core_type<tc>, window_params = [{transform_indices = @transform_0, window_bounds = array<i64: 1, 4, 256>}, {transform_indices = @transform_1, window_bounds = array<i64: 1, 4, 256>}, {pipeline_mode = #tpu.pipeline_mode<synchronous>, transform_indices = @transform_2, window_bounds = array<i64: 4, 4>}, {pipeline_mode = #tpu.pipeline_mode<synchronous>, transform_indices = @transform_3, window_bounds = array<i64: 4, 4>}, {pipeline_mode = #tpu.pipeline_mode<synchronous>, transform_indices = @transform_4, window_bounds = array<i64: 4, 1>}, {pipeline_mode = #tpu.pipeline_mode<synchronous>, transform_indices = @transform_5, window_bounds = array<i64: 4, 4>}, {pipeline_mode = #tpu.pipeline_mode<synchronous>, transform_indices = @transform_6, window_bounds = array<i64: 4, 1>}, {transform_indices = @transform_7, window_bounds = array<i64: 1, 4, 256>}]} {
    %c0 = arith.constant 0 : index
    %c0_0 = arith.constant 0 : index
    %0 = vector.load %arg4[%c0, %c0_0] : memref<4x4xf32, #tpu.memory_space<vmem>>, vector<4x4xf32>
    %c0_1 = arith.constant 0 : index
    %c0_2 = arith.constant 0 : index
    %1 = vector.load %arg5[%c0_1, %c0_2] : memref<4x4xf32, #tpu.memory_space<vmem>>, vector<4x4xf32>
    %c0_3 = arith.constant 0 : index
    %c0_4 = arith.constant 0 : index
    %2 = vector.load %arg7[%c0_3, %c0_4] : memref<4x4xf32, #tpu.memory_space<vmem>>, vector<4x4xf32>
    %c0_5 = arith.constant 0 : index
    %c0_6 = arith.constant 0 : index
    %3 = vector.load %arg6[%c0_5, %c0_6] : memref<4x1xf32, #tpu.memory_space<vmem>>, vector<4x1xf32>
    %c0_7 = arith.constant 0 : index
    %c0_8 = arith.constant 0 : index
    %4 = vector.load %arg8[%c0_7, %c0_8] : memref<4x1xf32, #tpu.memory_space<vmem>>, vector<4x1xf32>
    %c0_9 = arith.constant 0 : index
    %c0_10 = arith.constant 0 : index
    %c0_11 = arith.constant 0 : index
    %5 = vector.load %arg3[%c0_9, %c0_10, %c0_11] : memref<1x4x256xf32, #tpu.memory_space<vmem>>, vector<1x4x256xf32>
    %6 = vector.shape_cast %5 : vector<1x4x256xf32> to vector<4x256xf32>
    %c0_12 = arith.constant 0 : index
    %c0_13 = arith.constant 0 : index
    %c0_14 = arith.constant 0 : index
    %7 = vector.load %arg2[%c0_12, %c0_13, %c0_14] : memref<1x4x256xf32, #tpu.memory_space<vmem>>, vector<1x4x256xf32>
    %8 = vector.shape_cast %7 : vector<1x4x256xf32> to vector<4x256xf32>
    %cst = arith.constant dense<0.000000e+00> : vector<4x256xf32>
    %9 = tpu.matmul %0, %8, %cst {dimension_numbers = #tpu.dot_dimension_numbers<[1], [0], [0], [1], [0, 0, 1, 1], [], []>} : vector<4x4xf32>, vector<4x256xf32>, vector<4x256xf32> -> vector<4x256xf32>
    %cst_15 = arith.constant dense<0.000000e+00> : vector<4x256xf32>
    %10 = tpu.matmul %1, %6, %cst_15 {dimension_numbers = #tpu.dot_dimension_numbers<[1], [0], [0], [1], [0, 0, 1, 1], [], []>} : vector<4x4xf32>, vector<4x256xf32>, vector<4x256xf32> -> vector<4x256xf32>
    %11 = arith.addf %9, %10 : vector<4x256xf32>
    %12 = vector.broadcast %3 : vector<4x1xf32> to vector<4x256xf32>
    %13 = arith.addf %11, %12 : vector<4x256xf32>
    %cst_16 = arith.constant 0.000000e+00 : f32
    %14 = vector.broadcast %cst_16 : f32 to vector<4x256xf32>
    %15 = arith.maximumf %13, %14 : vector<4x256xf32>
    %cst_17 = arith.constant dense<0.000000e+00> : vector<4x256xf32>
    %16 = tpu.matmul %2, %15, %cst_17 {dimension_numbers = #tpu.dot_dimension_numbers<[1], [0], [0], [1], [0, 0, 1, 1], [], []>} : vector<4x4xf32>, vector<4x256xf32>, vector<4x256xf32> -> vector<4x256xf32>
    %17 = vector.broadcast %4 : vector<4x1xf32> to vector<4x256xf32>
    %18 = arith.addf %16, %17 : vector<4x256xf32>
    %cst_18 = arith.constant 0.000000e+00 : f32
    %19 = vector.broadcast %cst_18 : f32 to vector<4x256xf32>
    %20 = arith.subf %19, %18 : vector<4x256xf32>
    %21 = math.exp %20 : vector<4x256xf32>
    %cst_19 = arith.constant 1.000000e+00 : f32
    %22 = vector.broadcast %cst_19 : f32 to vector<4x256xf32>
    %23 = arith.addf %22, %21 : vector<4x256xf32>
    %24 = tpu.reciprocal %23 {approx = true} : vector<4x256xf32> -> vector<4x256xf32>
    %25 = arith.mulf %24, %6 : vector<4x256xf32>
    %c0_20 = arith.constant 0 : index
    %c0_21 = arith.constant 0 : index
    %c0_22 = arith.constant 0 : index
    %26 = vector.load %arg9[%c0_20, %c0_21, %c0_22] : memref<1x4x256xf32, #tpu.memory_space<vmem>>, vector<1x4x256xf32>
    %27 = vector.shape_cast %26 : vector<1x4x256xf32> to vector<4x256xf32>
    %28 = vector.shape_cast %25 : vector<4x256xf32> to vector<1x4x256xf32>
    tpu.vector_store %arg9[%c0_20, %c0_21, %c0_22], %28 {strides = array<i32>} : memref<1x4x256xf32, #tpu.memory_space<vmem>>, vector<1x4x256xf32>,
    return
  }
  func.func @transform_0(%arg0: i32, %arg1: i32) -> (i32, i32, i32) {
    %c0_i32 = arith.constant 0 : i32
    %c0_i32_0 = arith.constant 0 : i32
    return %arg0, %c0_i32, %arg1 : i32, i32, i32
  }
  func.func @transform_1(%arg0: i32, %arg1: i32) -> (i32, i32, i32) {
    %c0_i32 = arith.constant 0 : i32
    %c0_i32_0 = arith.constant 0 : i32
    return %arg0, %c0_i32, %arg1 : i32, i32, i32
  }
  func.func @transform_2(%arg0: i32, %arg1: i32) -> (i32, i32) {
    %c0_i32 = arith.constant 0 : i32
    %c0_i32_0 = arith.constant 0 : i32
    %c0_i32_1 = arith.constant 0 : i32
    return %c0_i32, %c0_i32_0 : i32, i32
  }
  func.func @transform_3(%arg0: i32, %arg1: i32) -> (i32, i32) {
    %c0_i32 = arith.constant 0 : i32
    %c0_i32_0 = arith.constant 0 : i32
    %c0_i32_1 = arith.constant 0 : i32
    return %c0_i32, %c0_i32_0 : i32, i32
  }
  func.func @transform_4(%arg0: i32, %arg1: i32) -> (i32, i32) {
    %c0_i32 = arith.constant 0 : i32
    %c0_i32_0 = arith.constant 0 : i32
    %c0_i32_1 = arith.constant 0 : i32
    return %c0_i32, %c0_i32_0 : i32, i32
  }
  func.func @transform_5(%arg0: i32, %arg1: i32) -> (i32, i32) {
    %c0_i32 = arith.constant 0 : i32
    %c0_i32_0 = arith.constant 0 : i32
    %c0_i32_1 = arith.constant 0 : i32
    return %c0_i32, %c0_i32_0 : i32, i32
  }
  func.func @transform_6(%arg0: i32, %arg1: i32) -> (i32, i32) {
    %c0_i32 = arith.constant 0 : i32
    %c0_i32_0 = arith.constant 0 : i32
    %c0_i32_1 = arith.constant 0 : i32
    return %c0_i32, %c0_i32_0 : i32, i32
  }
  func.func @transform_7(%arg0: i32, %arg1: i32) -> (i32, i32, i32) {
    %c0_i32 = arith.constant 0 : i32
    %c0_i32_0 = arith.constant 0 : i32
    return %arg0, %c0_i32, %arg1 : i32, i32, i32
  }
}

module attributes {stable_mosaic.version = 11 : i64} {
  func.func @kernel(%arg0: i32, %arg1: i32, %arg2: memref<1x4x256xf32, #tpu.memory_space<vmem>>, %arg3: memref<1x4x256xf32, #tpu.memory_space<vmem>>, %arg4: memref<4x4xf32, #tpu.memory_space<vmem>>, %arg5: memref<4x4xf32, #tpu.memory_space<vmem>>, %arg6: memref<4x1xf32, #tpu.memory_space<vmem>>, %arg7: memref<4x4xf32, #tpu.memory_space<vmem>>, %arg8: memref<4x1xf32, #tpu.memory_space<vmem>>, %arg9: memref<1x4x256xf32, #tpu.memory_space<vmem>>) attributes {dimension_semantics = [#tpu.dimension_semantics<parallel>, #tpu.dimension_semantics<parallel>], iteration_bounds = array<i64: 2, 1>, scalar_prefetch = 0 : i64, scratch_operands = 0 : i64, tpu.core_type = #tpu.core_type<tc>, window_params = [{transform_indices = @transform_0, window_bounds = array<i64: 1, 4, 256>}, {transform_indices = @transform_1, window_bounds = array<i64: 1, 4, 256>}, {pipeline_mode = #tpu.pipeline_mode<synchronous>, transform_indices = @transform_2, window_bounds = array<i64: 4, 4>}, {pipeline_mode = #tpu.pipeline_mode<synchronous>, transform_indices = @transform_3, window_bounds = array<i64: 4, 4>}, {pipeline_mode = #tpu.pipeline_mode<synchronous>, transform_indices = @transform_4, window_bounds = array<i64: 4, 1>}, {pipeline_mode = #tpu.pipeline_mode<synchronous>, transform_indices = @transform_5, window_bounds = array<i64: 4, 4>}, {pipeline_mode = #tpu.pipeline_mode<synchronous>, transform_indices = @transform_6, window_bounds = array<i64: 4, 1>}, {transform_indices = @transform_7, window_bounds = array<i64: 1, 4, 256>}]} {
    %c0 = arith.constant 0 : index
    %c0_0 = arith.constant 0 : index
    %0 = vector.load %arg4[%c0, %c0_0] : memref<4x4xf32, #tpu.memory_space<vmem>>, vector<4x4xf32>
    %c0_1 = arith.constant 0 : index
    %c0_2 = arith.constant 0 : index
    %1 = vector.load %arg5[%c0_1, %c0_2] : memref<4x4xf32, #tpu.memory_space<vmem>>, vector<4x4xf32>
    %c0_3 = arith.constant 0 : index
    %c0_4 = arith.constant 0 : index
    %2 = vector.load %arg7[%c0_3, %c0_4] : memref<4x4xf32, #tpu.memory_space<vmem>>, vector<4x4xf32>
    %c0_5 = arith.constant 0 : index
    %c0_6 = arith.constant 0 : index
    %3 = vector.load %arg6[%c0_5, %c0_6] : memref<4x1xf32, #tpu.memory_space<vmem>>, vector<4x1xf32>
    %c0_7 = arith.constant 0 : index
    %c0_8 = arith.constant 0 : index
    %4 = vector.load %arg8[%c0_7, %c0_8] : memref<4x1xf32, #tpu.memory_space<vmem>>, vector<4x1xf32>
    %c0_9 = arith.constant 0 : index
    %c0_10 = arith.constant 0 : index
    %c0_11 = arith.constant 0 : index
    %5 = vector.load %arg3[%c0_9, %c0_10, %c0_11] : memref<1x4x256xf32, #tpu.memory_space<vmem>>, vector<1x4x256xf32>
    %6 = vector.shape_cast %5 : vector<1x4x256xf32> to vector<4x256xf32>
    %c0_12 = arith.constant 0 : index
    %c0_13 = arith.constant 0 : index
    %c0_14 = arith.constant 0 : index
    %7 = vector.load %arg2[%c0_12, %c0_13, %c0_14] : memref<1x4x256xf32, #tpu.memory_space<vmem>>, vector<1x4x256xf32>
    %8 = vector.shape_cast %7 : vector<1x4x256xf32> to vector<4x256xf32>
    %cst = arith.constant dense<0.000000e+00> : vector<4x256xf32>
    %9 = tpu.matmul %0, %8, %cst {dimension_numbers = #tpu.dot_dimension_numbers<[1], [0], [0], [1], [0, 0, 1, 1], [], []>} : vector<4x4xf32>, vector<4x256xf32>, vector<4x256xf32> -> vector<4x256xf32>
    %cst_15 = arith.constant dense<0.000000e+00> : vector<4x256xf32>
    %10 = tpu.matmul %1, %6, %cst_15 {dimension_numbers = #tpu.dot_dimension_numbers<[1], [0], [0], [1], [0, 0, 1, 1], [], []>} : vector<4x4xf32>, vector<4x256xf32>, vector<4x256xf32> -> vector<4x256xf32>
    %11 = arith.addf %9, %10 : vector<4x256xf32>
    %12 = vector.broadcast %3 : vector<4x1xf32> to vector<4x256xf32>
    %13 = arith.addf %11, %12 : vector<4x256xf32>
    %cst_16 = arith.constant 0.000000e+00 : f32
    %14 = vector.broadcast %cst_16 : f32 to vector<4x256xf32>
    %15 = arith.maximumf %13, %14 : vector<4x256xf32>
    %cst_17 = arith.constant dense<0.000000e+00> : vector<4x256xf32>
    %16 = tpu.matmul %2, %15, %cst_17 {dimension_numbers = #tpu.dot_dimension_numbers<[1], [0], [0], [1], [0, 0, 1, 1], [], []>} : vector<4x4xf32>, vector<4x256xf32>, vector<4x256xf32> -> vector<4x256xf32>
    %17 = vector.broadcast %4 : vector<4x1xf32> to vector<4x256xf32>
    %18 = arith.addf %16, %17 : vector<4x256xf32>
    %cst_18 = arith.constant 0.000000e+00 : f32
    %19 = vector.broadcast %cst_18 : f32 to vector<4x256xf32>
    %20 = arith.subf %19, %18 : vector<4x256xf32>
    %21 = math.exp %20 : vector<4x256xf32>
    %cst_19 = arith.constant 1.000000e+00 : f32
    %22 = vector.broadcast %cst_19 : f32 to vector<4x256xf32>
    %23 = arith.addf %22, %21 : vector<4x256xf32>
    %24 = tpu.reciprocal %23 {approx = true} : vector<4x256xf32> -> vector<4x256xf32>
    %25 = arith.mulf %24, %6 : vector<4x256xf32>
    %c0_20 = arith.constant 0 : index
    %c0_21 = arith.constant 0 : index
    %c0_22 = arith.constant 0 : index
    %26 = vector.load %arg9[%c0_20, %c0_21, %c0_22] : memref<1x4x256xf32, #tpu.memory_space<vmem>>, vector<1x4x256xf32>
    %27 = vector.shape_cast %26 : vector<1x4x256xf32> to vector<4x256xf32>
    %28 = vector.shape_cast %25 : vector<4x256xf32> to vector<1x4x256xf32>
    tpu.vector_store %arg9[%c0_20, %c0_21, %c0_22], %28 {strides = array<i32>} : memref<1x4x256xf32, #tpu.memory_space<vmem>>, vector<1x4x256xf32>,
    return
  }
  func.func @transform_0(%arg0: i32, %arg1: i32) -> (i32, i32, i32) {
    %c0_i32 = arith.constant 0 : i32
    %c0_i32_0 = arith.constant 0 : i32
    return %arg0, %c0_i32, %arg1 : i32, i32, i32
  }
  func.func @transform_1(%arg0: i32, %arg1: i32) -> (i32, i32, i32) {
    %c0_i32 = arith.constant 0 : i32
    %c0_i32_0 = arith.constant 0 : i32
    return %arg0, %c0_i32, %arg1 : i32, i32, i32
  }
  func.func @transform_2(%arg0: i32, %arg1: i32) -> (i32, i32) {
    %c0_i32 = arith.constant 0 : i32
    %c0_i32_0 = arith.constant 0 : i32
    %c0_i32_1 = arith.constant 0 : i32
    return %c0_i32, %c0_i32_0 : i32, i32
  }
  func.func @transform_3(%arg0: i32, %arg1: i32) -> (i32, i32) {
    %c0_i32 = arith.constant 0 : i32
    %c0_i32_0 = arith.constant 0 : i32
    %c0_i32_1 = arith.constant 0 : i32
    return %c0_i32, %c0_i32_0 : i32, i32
  }
  func.func @transform_4(%arg0: i32, %arg1: i32) -> (i32, i32) {
    %c0_i32 = arith.constant 0 : i32
    %c0_i32_0 = arith.constant 0 : i32
    %c0_i32_1 = arith.constant 0 : i32
    return %c0_i32, %c0_i32_0 : i32, i32
  }
  func.func @transform_5(%arg0: i32, %arg1: i32) -> (i32, i32) {
    %c0_i32 = arith.constant 0 : i32
    %c0_i32_0 = arith.constant 0 : i32
    %c0_i32_1 = arith.constant 0 : i32
    return %c0_i32, %c0_i32_0 : i32, i32
  }
  func.func @transform_6(%arg0: i32, %arg1: i32) -> (i32, i32) {
    %c0_i32 = arith.constant 0 : i32
    %c0_i32_0 = arith.constant 0 : i32
    %c0_i32_1 = arith.constant 0 : i32
    return %c0_i32, %c0_i32_0 : i32, i32
  }
  func.func @transform_7(%arg0: i32, %arg1: i32) -> (i32, i32, i32) {
    %c0_i32 = arith.constant 0 : i32
    %c0_i32_0 = arith.constant 0 : i32
    return %arg0, %c0_i32, %arg1 : i32, i32, i32
  }
}

</mosaic_0001>

<llo_original>
// kernel: tpu_custom_call.1
$region0: #{tpu_custom_call.1}
  #allocation0 [shape = 'u32[]', space=smem, size = 0x4, offset = 0x4, fixed_abs, tag = 'smem constant byte address 0x4 - core index']
  #allocation1 [shape = 'u32[144,128]{1,0:T(1,128)}', space=vmem, size = 0x12000, scoped, tag = 'internal scratch']
  %s0 = inlined_call_operand.hbm [shape: f32[2,4,256], index: 0, kind: input, shape index: {}]
  %s1 = inlined_call_operand.hbm [shape: f32[2,4,256], index: 1, kind: input, shape index: {}]
  %s2 = inlined_call_operand.vmem [shape: f32[4,4], index: 2, kind: input, shape index: {}]
  %s3 = inlined_call_operand.vmem [shape: f32[4,4], index: 3, kind: input, shape index: {}]
  %s4 = inlined_call_operand.vmem [shape: f32[4,1], index: 4, kind: input, shape index: {}]
  %s5 = inlined_call_operand.vmem [shape: f32[4,4], index: 5, kind: input, shape index: {}]
  %s6 = inlined_call_operand.vmem [shape: f32[4,1], index: 6, kind: input, shape index: {}]
  %s7 = inlined_call_operand.hbm [shape: f32[2,4,256], index: 7, kind: output, shape index: {}]
  %s8 = sld [smem:[#allocation0]]
  $region69: #{tpu_custom_call.1} parent=0
    _
  %s10 = ssub.s32 1, %s8
  %s11 = scalar_select 0, %s10, %s8
  $region1: #{tpu_custom_call.1} parent=0
    #allocation2 [shape = 'u8[8192]{0}', space=vmem, size = 0x2000, scoped, tag = 'input window, operand 0']
    #allocation3 [shape = 's32[2]{0}', space=sflag, size = 0x8, scoped, tag = 'scoped memory for tpu_custom_call.1']
    #allocation4 [shape = 's32[2]{0}', space=sflag, size = 0x8, scoped, tag = 'scoped memory for tpu_custom_call.1']
    #allocation5 [shape = 'u8[8192]{0}', space=vmem, size = 0x2000, scoped, tag = 'input window, operand 1']
    #allocation6 [shape = 's32[2]{0}', space=sflag, size = 0x8, scoped, tag = 'scoped memory for tpu_custom_call.1']
    #allocation7 [shape = 'u8[8192]{0}', space=vmem, size = 0x2000, scoped, tag = 'output window, operand 0']
    %12 = vsyncpa [#allocation3], 0
    %s13 = scalar_lea.sflag [#allocation3], 1
    %14 = vsyncpa %s13, 0
    %15 = vsyncpa [#allocation6], 0
    %s16 = scalar_lea.sflag [#allocation6], 1
    %17 = vsyncpa %s16, 0
    %18 = vsyncpa [#allocation4], 0
    %s19 = scalar_lea.sflag [#allocation4], 1
    %20 = vsyncpa %s19, 0
    loop: start=0, step=1, limit=4
    $region2: #{tpu_custom_call.1} parent=1 // loop_pre_header
      _
    $region3: #{tpu_custom_call.1} parent=1 // loop_header
      %s22 = sphi 0, %s26
      %p23 = scmp.ge.s32.totalorder %s22, 4
      %s29 = sphi 0, %s41
      %s30 = sphi 0, %s37
      %s31 = sphi 0, %s29
      %s32 = sphi 0, %s30
      %s33 = sphi 0, %s31
      %s34 = sphi 0, %s32
      %s46 = sphi 0, %s48
      %s49 = sphi 0, %s46
      %s50 = sphi 0, %s49
      %s66 = sphi 0, %s50
      %s74 = sphi 0, %s76
      %s77 = sphi 0, %s74
      %s78 = sphi 0, %s77
      %s94 = sphi 0, %s78
      %s98 = sphi 0, %s98
      %s100 = sphi 0, %s98
      %s101 = sphi 0, %s100
      %s115 = sphi 0, %s101
      %s119 = sphi 0, %s119
      %s121 = sphi 0, %s119
      %s122 = sphi 0, %s121
      %s136 = sphi 0, %s122
      %s140 = sphi 0, %s140
      %s142 = sphi 0, %s140
      %s143 = sphi 0, %s142
      %s157 = sphi 0, %s143
      %s161 = sphi 0, %s161
      %s163 = sphi 0, %s161
      %s164 = sphi 0, %s163
      %s178 = sphi 0, %s164
      %s182 = sphi 0, %s182
      %s184 = sphi 0, %s182
      %s185 = sphi 0, %s184
      %s199 = sphi 0, %s185
      %s207 = sphi 0, %s209
      %s210 = sphi 0, %s207
      %s211 = sphi 0, %s210
      %s227 = sphi 0, %s211
    $region4: #{tpu_custom_call.1} parent=1 // loop_header_branch
      %25 = sbr.rel (%p23) target = $region8
    $region5: #{tpu_custom_call.1} parent=1 // loop_body
      %s27 = ssub.s32 %s22, 1
      %s28 = ssub.s32 %s22, 2
      %s35 = sadd.s32 1, %s30
      %p36 = scmp.ge.s32.totalorder %s35, 1
      %s37 = scalar_select %p36, 0, %s35
      %s38 = sadd.s32 1, %s29
      %s39 = scalar_select %p36, %s38, %s29
      %p40 = scmp.ge.s32.totalorder %s39, 2
      %s41 = scalar_select %p40, 0, %s39
      %s42 = ssub.s32 %s29, %s41
      %s43 = ssub.s32 %s30, %s37
      %s44 = sor.u32 %s42, %s43
      %p45 = scmp.eq.s32.totalorder %s44, 0
      %s47 = sadd.s32 %s46, 1
      %s48 = scalar_select %p45, %s46, %s47
      %p51 = pneg %p45
      %p52 = scmp.eq.s32.totalorder %s22, 1
      %p53 = por %p51, %p52
      %p54 = scmp.ne.s32.totalorder %s46, %s49
      %p55 = scmp.eq.s32.totalorder %s22, 0
      %p56 = por %p54, %p55
      %p57 = scmp.ne.s32.totalorder %s46, %s49
      %p58 = scmp.eq.s32.totalorder %s27, 1
      %p59 = por %p57, %p58
      %p60 = scmp.ne.s32.totalorder %s49, %s50
      %p61 = scmp.eq.s32.totalorder %s27, 0
      %p62 = por %p60, %p61
      %p63 = scmp.ne.s32.totalorder %s49, %s50
      %p64 = scmp.eq.s32.totalorder %s28, 1
      %p65 = por %p63, %p64
      %p67 = scmp.ne.s32.totalorder %s50, %s66
      %p68 = scmp.eq.s32.totalorder %s28, 0
      %p69 = por %p67, %p68
      %s70 = ssub.s32 %s29, %s41
      %s71 = ssub.s32 %s30, %s37
      %s72 = sor.u32 %s70, %s71
      %p73 = scmp.eq.s32.totalorder %s72, 0
      %s75 = sadd.s32 %s74, 1
      %s76 = scalar_select %p73, %s74, %s75
      %p79 = pneg %p73
      %p80 = scmp.eq.s32.totalorder %s22, 1
      %p81 = por %p79, %p80
      %p82 = scmp.ne.s32.totalorder %s74, %s77
      %p83 = scmp.eq.s32.totalorder %s22, 0
      %p84 = por %p82, %p83
      %p85 = scmp.ne.s32.totalorder %s74, %s77
      %p86 = scmp.eq.s32.totalorder %s27, 1
      %p87 = por %p85, %p86
      %p88 = scmp.ne.s32.totalorder %s77, %s78
      %p89 = scmp.eq.s32.totalorder %s27, 0
      %p90 = por %p88, %p89
      %p91 = scmp.ne.s32.totalorder %s77, %s78
      %p92 = scmp.eq.s32.totalorder %s28, 1
      %p93 = por %p91, %p92
      %p95 = scmp.ne.s32.totalorder %s78, %s94
      %p96 = scmp.eq.s32.totalorder %s28, 0
      %p97 = por %p95, %p96
      %s99 = sadd.s32 %s98, 1
      %p102 = scmp.eq.s32.totalorder %s22, 1
      %p103 = scmp.ne.s32.totalorder %s98, %s100
      %p104 = scmp.eq.s32.totalorder %s22, 0
      %p105 = por %p103, %p104
      %p106 = scmp.ne.s32.totalorder %s98, %s100
      %p107 = scmp.eq.s32.totalorder %s27, 1
      %p108 = por %p106, %p107
      %p109 = scmp.ne.s32.totalorder %s100, %s101
      %p110 = scmp.eq.s32.totalorder %s27, 0
      %p111 = por %p109, %p110
      %p112 = scmp.ne.s32.totalorder %s100, %s101
      %p113 = scmp.eq.s32.totalorder %s28, 1
      %p114 = por %p112, %p113
      %p116 = scmp.ne.s32.totalorder %s101, %s115
      %p117 = scmp.eq.s32.totalorder %s28, 0
      %p118 = por %p116, %p117
      %s120 = sadd.s32 %s119, 1
      %p123 = scmp.eq.s32.totalorder %s22, 1
      %p124 = scmp.ne.s32.totalorder %s119, %s121
      %p125 = scmp.eq.s32.totalorder %s22, 0
      %p126 = por %p124, %p125
      %p127 = scmp.ne.s32.totalorder %s119, %s121
      %p128 = scmp.eq.s32.totalorder %s27, 1
      %p129 = por %p127, %p128
      %p130 = scmp.ne.s32.totalorder %s121, %s122
      %p131 = scmp.eq.s32.totalorder %s27, 0
      %p132 = por %p130, %p131
      %p133 = scmp.ne.s32.totalorder %s121, %s122
      %p134 = scmp.eq.s32.totalorder %s28, 1
      %p135 = por %p133, %p134
      %p137 = scmp.ne.s32.totalorder %s122, %s136
      %p138 = scmp.eq.s32.totalorder %s28, 0
      %p139 = por %p137, %p138
      %s141 = sadd.s32 %s140, 1
      %p144 = scmp.eq.s32.totalorder %s22, 1
      %p145 = scmp.ne.s32.totalorder %s140, %s142
      %p146 = scmp.eq.s32.totalorder %s22, 0
      %p147 = por %p145, %p146
      %p148 = scmp.ne.s32.totalorder %s140, %s142
      %p149 = scmp.eq.s32.totalorder %s27, 1
      %p150 = por %p148, %p149
      %p151 = scmp.ne.s32.totalorder %s142, %s143
      %p152 = scmp.eq.s32.totalorder %s27, 0
      %p153 = por %p151, %p152
      %p154 = scmp.ne.s32.totalorder %s142, %s143
      %p155 = scmp.eq.s32.totalorder %s28, 1
      %p156 = por %p154, %p155
      %p158 = scmp.ne.s32.totalorder %s143, %s157
      %p159 = scmp.eq.s32.totalorder %s28, 0
      %p160 = por %p158, %p159
      %s162 = sadd.s32 %s161, 1
      %p165 = scmp.eq.s32.totalorder %s22, 1
      %p166 = scmp.ne.s32.totalorder %s161, %s163
      %p167 = scmp.eq.s32.totalorder %s22, 0
      %p168 = por %p166, %p167
      %p169 = scmp.ne.s32.totalorder %s161, %s163
      %p170 = scmp.eq.s32.totalorder %s27, 1
      %p171 = por %p169, %p170
      %p172 = scmp.ne.s32.totalorder %s163, %s164
      %p173 = scmp.eq.s32.totalorder %s27, 0
      %p174 = por %p172, %p173
      %p175 = scmp.ne.s32.totalorder %s163, %s164
      %p176 = scmp.eq.s32.totalorder %s28, 1
      %p177 = por %p175, %p176
      %p179 = scmp.ne.s32.totalorder %s164, %s178
      %p180 = scmp.eq.s32.totalorder %s28, 0
      %p181 = por %p179, %p180
      %s183 = sadd.s32 %s182, 1
      %p186 = scmp.eq.s32.totalorder %s22, 1
      %p187 = scmp.ne.s32.totalorder %s182, %s184
      %p188 = scmp.eq.s32.totalorder %s22, 0
      %p189 = por %p187, %p188
      %p190 = scmp.ne.s32.totalorder %s182, %s184
      %p191 = scmp.eq.s32.totalorder %s27, 1
      %p192 = por %p190, %p191
      %p193 = scmp.ne.s32.totalorder %s184, %s185
      %p194 = scmp.eq.s32.totalorder %s27, 0
      %p195 = por %p193, %p194
      %p196 = scmp.ne.s32.totalorder %s184, %s185
      %p197 = scmp.eq.s32.totalorder %s28, 1
      %p198 = por %p196, %p197
      %p200 = scmp.ne.s32.totalorder %s185, %s199
      %p201 = scmp.eq.s32.totalorder %s28, 0
      %p202 = por %p200, %p201
      %s203 = ssub.s32 %s29, %s41
      %s204 = ssub.s32 %s30, %s37
      %s205 = sor.u32 %s203, %s204
      %p206 = scmp.eq.s32.totalorder %s205, 0
      %s208 = sadd.s32 %s207, 1
      %s209 = scalar_select %p206, %s207, %s208
      %p212 = pneg %p206
      %p213 = scmp.eq.s32.totalorder %s22, 1
      %p214 = por %p212, %p213
      %p215 = scmp.ne.s32.totalorder %s207, %s210
      %p216 = scmp.eq.s32.totalorder %s22, 0
      %p217 = por %p215, %p216
      %p218 = scmp.ne.s32.totalorder %s207, %s210
      %p219 = scmp.eq.s32.totalorder %s27, 1
      %p220 = por %p218, %p219
      %p221 = scmp.ne.s32.totalorder %s210, %s211
      %p222 = scmp.eq.s32.totalorder %s27, 0
      %p223 = por %p221, %p222
      %p224 = scmp.ne.s32.totalorder %s210, %s211
      %p225 = scmp.eq.s32.totalorder %s28, 1
      %p226 = por %p224, %p225
      %p228 = scmp.ne.s32.totalorder %s211, %s227
      %p229 = scmp.eq.s32.totalorder %s28, 0
      %p230 = por %p228, %p229
      %p231 = scmp.le.s32.totalorder 1, %s22
      %p232 = scmp.lt.s32.totalorder %s22, 3
      %p233 = pnand %p231, %p232
      %p234 = pneg %p233
      // Predicated region
      $region9: #{tpu_custom_call.1} parent=5 // pred_check
        _
      $region10: #{tpu_custom_call.1} parent=5 // pred_check_branch
        %236 = sbr.rel (%p233) target = $region12
      $region11: #{tpu_custom_call.1} parent=5 // pred_region
        %s237 = ssub.s32 %s22, 1
        // Predicated region
        $region13: #{tpu_custom_call.1} parent=11 // pred_check
          %p238 = pneg %p111
        $region14: #{tpu_custom_call.1} parent=11 // pred_check_branch
          %240 = sbr.rel (%p238) target = $region16
        $region15: #{tpu_custom_call.1} parent=11 // pred_region
          _
        $region16: #{tpu_custom_call.1} parent=11 // pred_fallthru
          _
        // Predicated region
        $region17: #{tpu_custom_call.1} parent=11 // pred_check
          %p241 = pneg %p132
        $region18: #{tpu_custom_call.1} parent=11 // pred_check_branch
          %243 = sbr.rel (%p241) target = $region20
        $region19: #{tpu_custom_call.1} parent=11 // pred_region
          _
        $region20: #{tpu_custom_call.1} parent=11 // pred_fallthru
          _
        // Predicated region
        $region21: #{tpu_custom_call.1} parent=11 // pred_check
          %p244 = pneg %p153
        $region22: #{tpu_custom_call.1} parent=11 // pred_check_branch
          %246 = sbr.rel (%p244) target = $region24
        $region23: #{tpu_custom_call.1} parent=11 // pred_region
          _
        $region24: #{tpu_custom_call.1} parent=11 // pred_fallthru
          _
        // Predicated region
        $region25: #{tpu_custom_call.1} parent=11 // pred_check
          %p247 = pneg %p174
        $region26: #{tpu_custom_call.1} parent=11 // pred_check_branch
          %249 = sbr.rel (%p247) target = $region28
        $region27: #{tpu_custom_call.1} parent=11 // pred_region
          _
        $region28: #{tpu_custom_call.1} parent=11 // pred_fallthru
          _
        // Predicated region
        $region29: #{tpu_custom_call.1} parent=11 // pred_check
          %p250 = pneg %p195
        $region30: #{tpu_custom_call.1} parent=11 // pred_check_branch
          %252 = sbr.rel (%p250) target = $region32
        $region31: #{tpu_custom_call.1} parent=11 // pred_region
          _
        $region32: #{tpu_custom_call.1} parent=11 // pred_fallthru
          _
      $region12: #{tpu_custom_call.1} parent=5 // pred_fallthru
        _
      %p253 = scmp.lt.s32.totalorder %s22, 2
      // Predicated region
      $region33: #{tpu_custom_call.1} parent=5 // pred_check
        %p254 = pneg %p253
      $region34: #{tpu_custom_call.1} parent=5 // pred_check_branch
        %256 = sbr.rel (%p254) target = $region36
      $region35: #{tpu_custom_call.1} parent=5 // pred_region
        // Predicated region
        $region37: #{tpu_custom_call.1} parent=35 // pred_check
          %p257 = pneg %p56
        $region38: #{tpu_custom_call.1} parent=35 // pred_check_branch
          %259 = sbr.rel (%p257) target = $region40
        $region39: #{tpu_custom_call.1} parent=35 // pred_region
          %s260 = sand.u32 %s46, 1
          %s261 = scalar_lea.sflag [#allocation3], %s260
          %s262 = sand.u32 %s46, 1
          %s263 = smul.addr %s262, 8
          %s264 = scalar_lea.vmem [#allocation2], %s263
          %s265 = smul.u32 2, %s30
          %s267 = ssub.s32 128, 128
          %268 = vsyncadd %s261, %s267
          %s269 = smul.addr %s29, 2
          %s270 = sadd.s32 %s265, %s269
          %s271 = smul.addr %s270, 64
          %s272 = scalar_lea.hbm %s0, %s271
          %s274 = sshll.u32 %s264, 4
          %s275 = int_to_ptr.vmem [resolvable:$true] %s274
          %277 = dma.hbm_to_vmem [thread:$0]  %s272, 128, %s275, %s261
        $region40: #{tpu_custom_call.1} parent=35 // pred_fallthru
          _
        // Predicated region
        $region41: #{tpu_custom_call.1} parent=35 // pred_check
          %p278 = pneg %p84
        $region42: #{tpu_custom_call.1} parent=35 // pred_check_branch
          %280 = sbr.rel (%p278) target = $region44
        $region43: #{tpu_custom_call.1} parent=35 // pred_region
          %s281 = sand.u32 %s74, 1
          %s282 = scalar_lea.sflag [#allocation6], %s281
          %s283 = sand.u32 %s74, 1
          %s284 = smul.addr %s283, 8
          %s285 = scalar_lea.vmem [#allocation5], %s284
          %s286 = smul.u32 2, %s30
          %s288 = ssub.s32 128, 128
          %289 = vsyncadd %s282, %s288
          %s290 = smul.addr %s29, 2
          %s291 = sadd.s32 %s286, %s290
          %s292 = smul.addr %s291, 64
          %s293 = scalar_lea.hbm %s1, %s292
          %s295 = sshll.u32 %s285, 4
          %s296 = int_to_ptr.vmem [resolvable:$true] %s295
          %298 = dma.hbm_to_vmem [thread:$0]  %s293, 128, %s296, %s282
        $region44: #{tpu_custom_call.1} parent=35 // pred_fallthru
          _
      $region36: #{tpu_custom_call.1} parent=5 // pred_fallthru
        _
      %p299 = scmp.le.s32.totalorder 1, %s22
      %p300 = scmp.lt.s32.totalorder %s22, 3
      %p301 = pnand %p299, %p300
      %p302 = pneg %p301
      // Predicated region
      $region45: #{tpu_custom_call.1} parent=5 // pred_check
        _
      $region46: #{tpu_custom_call.1} parent=5 // pred_check_branch
        %304 = sbr.rel (%p301) target = $region48
      $region47: #{tpu_custom_call.1} parent=5 // pred_region
        %s305 = ssub.s32 %s22, 1
        %s306 = sand.u32 %s49, 1
        %s307 = scalar_lea.sflag [#allocation3], %s306
        %s308 = sand.u32 %s49, 1
        %s309 = smul.addr %s308, 8
        %s310 = scalar_lea.vmem [#allocation2], %s309
        // Predicated region
        $region49: #{tpu_custom_call.1} parent=47 // pred_check
          %p311 = pneg %p62
        $region50: #{tpu_custom_call.1} parent=47 // pred_check_branch
          %313 = sbr.rel (%p311) target = $region52
        $region51: #{tpu_custom_call.1} parent=47 // pred_region
          %314 = dma.done %s307, 128
        $region52: #{tpu_custom_call.1} parent=47 // pred_fallthru
          _
        %s315 = sand.u32 %s77, 1
        %s316 = scalar_lea.sflag [#allocation6], %s315
        %s317 = sand.u32 %s77, 1
        %s318 = smul.addr %s317, 8
        %s319 = scalar_lea.vmem [#allocation5], %s318
        // Predicated region
        $region53: #{tpu_custom_call.1} parent=47 // pred_check
          %p320 = pneg %p90
        $region54: #{tpu_custom_call.1} parent=47 // pred_check_branch
          %322 = sbr.rel (%p320) target = $region56
        $region55: #{tpu_custom_call.1} parent=47 // pred_region
          %323 = dma.done %s316, 128
        $region56: #{tpu_custom_call.1} parent=47 // pred_fallthru
          _
        %s324 = sand.u32 %s49, 1
        %s325 = scalar_lea.sflag [#allocation3], %s324
        %s326 = sand.u32 %s49, 1
        %s327 = smul.addr %s326, 8
        %s328 = scalar_lea.vmem [#allocation2], %s327
        %p329 = pneg %p62
        %p330 = pneg %p59
        %s331 = sand.u32 %s77, 1
        %s332 = scalar_lea.sflag [#allocation6], %s331
        %s333 = sand.u32 %s77, 1
        %s334 = smul.addr %s333, 8
        %s335 = scalar_lea.vmem [#allocation5], %s334
        %p336 = pneg %p90
        %p337 = pneg %p87
        %p338 = pneg %p111
        %p339 = pneg %p108
        %p340 = pneg %p132
        %p341 = pneg %p129
        %p342 = pneg %p153
        %p343 = pneg %p150
        %p344 = pneg %p174
        %p345 = pneg %p171
        %p346 = pneg %p195
        %p347 = pneg %p192
        %p348 = pneg %p223
        %p349 = pneg %p220
        %s350 = sand.u32 %s210, 1
        %s351 = scalar_lea.sflag [#allocation4], %s350
        %s352 = sand.u32 %s210, 1
        %s353 = smul.addr %s352, 8
        %s354 = scalar_lea.vmem [#allocation7], %s353
        %s355 = smul.u32 2, %s32
        %s356 = smul.u32 2, %s32
        %s357 = smul.u32 2, %s32
        %v358 = vld [vmem:[%s2] sm:$0xf]
        %v359 = vld [vmem:[%s3] sm:$0xf]
        %v360 = vld [vmem:[%s5] sm:$0xf]
        %v361 = vld [vmem:[%s4] sm:$0xf]
        %v362 = vld [vmem:[%s6] sm:$0xf]
        %v363 = vld [vmem:[%s319] sm:$0xff]
        %v364 = vld [vmem:[%s310] sm:$0xff]
        %v366 = vcombine.high %v363, %v363
        %vm367 = vcmask 31744
        %v369 = vsel %vm367, %v359, 0
        %vm371 = vcmask 1043456
        %v372 = vsel %vm371, %v363, 0
        %v374 = vsel %vm371, %v366, 0
        %376 = vmatprep.subr.mxu0 %v374
        %377 = vmatpush1.msra.mxu0 %v372
        %378 = vmatprep.subr.mxu0 0.0
        %379 = vmatpush1.msra.mxu0 0.0
        %380 = vmatprep.subr.mxu0 0.0
        %381 = vmatpush1.msra.mxu0 0.0
        %382 = vmatprep.subr.mxu0 0.0
        %383 = vmatpush1.msra.mxu0 0.0
        %384 = vmatprep.subr.mxu0 0.0
        %385 = vmatpush1.msra.mxu0 0.0
        %386 = vmatprep.subr.mxu0 0.0
        %387 = vmatpush1.msra.mxu0 0.0
        %388 = vmatprep.subr.mxu0 0.0
        %389 = vmatpush1.msra.mxu0 0.0
        %390 = vmatprep.subr.mxu0 0.0
        %391 = vmatpush1.msra.mxu0 0.0
        %392 = vmatprep.subr.mxu0 0.0
        %393 = vmatpush1.msra.mxu0 0.0
        %394 = vmatprep.subr.mxu0 0.0
        %395 = vmatpush1.msra.mxu0 0.0
        %396 = vmatprep.subr.mxu0 0.0
        %397 = vmatpush1.msra.mxu0 0.0
        %398 = vmatprep.subr.mxu0 0.0
        %399 = vmatpush1.msra.mxu0 0.0
        %400 = vmatprep.subr.mxu0 0.0
        %401 = vmatpush1.msra.mxu0 0.0
        %402 = vmatprep.subr.mxu0 0.0
        %403 = vmatpush1.msra.mxu0 0.0
        %404 = vmatprep.subr.mxu0 0.0
        %405 = vmatpush1.msra.mxu0 0.0
        %406 = vmatprep.subr.mxu0 0.0
        %407 = vmatpush1.msra.mxu0 0.0
        %408 = vmatprep.subr.mxu0 0.0
        %409 = vmatpush1.msra.mxu0 0.0
        %410 = vmatprep.subr.mxu0 0.0
        %411 = vmatpush1.msra.mxu0 0.0
        %412 = vmatprep.subr.mxu0 0.0
        %413 = vmatpush1.msra.mxu0 0.0
        %414 = vmatprep.subr.mxu0 0.0
        %415 = vmatpush1.msra.mxu0 0.0
        %416 = vmatprep.subr.mxu0 0.0
        %417 = vmatpush1.msra.mxu0 0.0
        %418 = vmatprep.subr.mxu0 0.0
        %419 = vmatpush1.msra.mxu0 0.0
        %420 = vmatprep.subr.mxu0 0.0
        %421 = vmatpush1.msra.mxu0 0.0
        %422 = vmatprep.subr.mxu0 0.0
        %423 = vmatpush1.msra.mxu0 0.0
        %424 = vmatprep.subr.mxu0 0.0
        %425 = vmatpush1.msra.mxu0 0.0
        %426 = vmatprep.subr.mxu0 0.0
        %427 = vmatpush1.msra.mxu0 0.0
        %428 = vmatprep.subr.mxu0 0.0
        %429 = vmatpush1.msra.mxu0 0.0
        %430 = vmatprep.subr.mxu0 0.0
        %431 = vmatpush1.msra.mxu0 0.0
        %432 = vmatprep.subr.mxu0 0.0
        %433 = vmatpush1.msra.mxu0 0.0
        %434 = vmatprep.subr.mxu0 0.0
        %435 = vmatpush1.msra.mxu0 0.0
        %436 = vmatprep.subr.mxu0 0.0
        %437 = vmatpush1.msra.mxu0 0.0
        %438 = vmatprep.subr.mxu0 0.0
        %439 = vmatpush1.msra.mxu0 0.0
        %440 = vmatprep.mubr.f32.mxu0 0.0
        %441 = vmatmul.mubr.f32.gmra.mrb[0].mxu0 %v369
        %v442 = vpop.f32.mrb[0].mxu0
        %v443 = vadd.f32 0.0, %v442
        %v444 = vpop.f32.mrb[0].mxu0
        %v445 = vadd.f32 0.0, %v444
        %446 = vdwg.mxu0
        %v448 = vcombine.high %v364, %v364
        %v450 = vsel %vm367, %v358, 0
        %v452 = vsel %vm371, %v364, 0
        %v454 = vsel %vm371, %v448, 0
        %456 = vmatprep.subr.mxu0 %v454
        %457 = vmatpush1.msra.mxu0 %v452
        %458 = vmatprep.subr.mxu0 0.0
        %459 = vmatpush1.msra.mxu0 0.0
        %460 = vmatprep.subr.mxu0 0.0
        %461 = vmatpush1.msra.mxu0 0.0
        %462 = vmatprep.subr.mxu0 0.0
        %463 = vmatpush1.msra.mxu0 0.0
        %464 = vmatprep.subr.mxu0 0.0
        %465 = vmatpush1.msra.mxu0 0.0
        %466 = vmatprep.subr.mxu0 0.0
        %467 = vmatpush1.msra.mxu0 0.0
        %468 = vmatprep.subr.mxu0 0.0
        %469 = vmatpush1.msra.mxu0 0.0
        %470 = vmatprep.subr.mxu0 0.0
        %471 = vmatpush1.msra.mxu0 0.0
        %472 = vmatprep.subr.mxu0 0.0
        %473 = vmatpush1.msra.mxu0 0.0
        %474 = vmatprep.subr.mxu0 0.0
        %475 = vmatpush1.msra.mxu0 0.0
        %476 = vmatprep.subr.mxu0 0.0
        %477 = vmatpush1.msra.mxu0 0.0
        %478 = vmatprep.subr.mxu0 0.0
        %479 = vmatpush1.msra.mxu0 0.0
        %480 = vmatprep.subr.mxu0 0.0
        %481 = vmatpush1.msra.mxu0 0.0
        %482 = vmatprep.subr.mxu0 0.0
        %483 = vmatpush1.msra.mxu0 0.0
        %484 = vmatprep.subr.mxu0 0.0
        %485 = vmatpush1.msra.mxu0 0.0
        %486 = vmatprep.subr.mxu0 0.0
        %487 = vmatpush1.msra.mxu0 0.0
        %488 = vmatprep.subr.mxu0 0.0
        %489 = vmatpush1.msra.mxu0 0.0
        %490 = vmatprep.subr.mxu0 0.0
        %491 = vmatpush1.msra.mxu0 0.0
        %492 = vmatprep.subr.mxu0 0.0
        %493 = vmatpush1.msra.mxu0 0.0
        %494 = vmatprep.subr.mxu0 0.0
        %495 = vmatpush1.msra.mxu0 0.0
        %496 = vmatprep.subr.mxu0 0.0
        %497 = vmatpush1.msra.mxu0 0.0
        %498 = vmatprep.subr.mxu0 0.0
        %499 = vmatpush1.msra.mxu0 0.0
        %500 = vmatprep.subr.mxu0 0.0
        %501 = vmatpush1.msra.mxu0 0.0
        %502 = vmatprep.subr.mxu0 0.0
        %503 = vmatpush1.msra.mxu0 0.0
        %504 = vmatprep.subr.mxu0 0.0
        %505 = vmatpush1.msra.mxu0 0.0
        %506 = vmatprep.subr.mxu0 0.0
        %507 = vmatpush1.msra.mxu0 0.0
        %508 = vmatprep.subr.mxu0 0.0
        %509 = vmatpush1.msra.mxu0 0.0
        %510 = vmatprep.subr.mxu0 0.0
        %511 = vmatpush1.msra.mxu0 0.0
        %512 = vmatprep.subr.mxu0 0.0
        %513 = vmatpush1.msra.mxu0 0.0
        %514 = vmatprep.subr.mxu0 0.0
        %515 = vmatpush1.msra.mxu0 0.0
        %516 = vmatprep.subr.mxu0 0.0
        %517 = vmatpush1.msra.mxu0 0.0
        %518 = vmatprep.subr.mxu0 0.0
        %519 = vmatpush1.msra.mxu0 0.0
        %520 = vmatprep.mubr.f32.mxu0 0.0
        %521 = vmatmul.mubr.f32.gmra.mrb[0].mxu0 %v450
        %v522 = vpop.f32.mrb[0].mxu0
        %v523 = vadd.f32 %v443, %v522
        %v524 = vpop.f32.mrb[0].mxu0
        %v525 = vadd.f32 %v445, %v524
        %526 = vdwg.mxu0
        %528 = vset.pattern.permute.xlu0 0
        %529 = vperm.xlu0 %528, %v361
        %v530 = vpop.permute.xlu0 %529
        %v532 = vadd.f32 %v523, %v530
        %v533 = vadd.f32 %v525, %v530
        %v534 = vmax.f32 %v532, 0.0
        %v535 = vmax.f32 %v533, 0.0
        %537 = vset.pattern.permute.xlu0 0
        %538 = vperm.xlu0 %537, %v362
        %v539 = vpop.permute.xlu0 %538
        %v542 = vsel %vm367, %v360, 0
        %v545 = vsel %vm371, %v534, 0
        %v548 = vsel %vm371, %v535, 0
        %550 = vmatprep.subr.mxu0 %v548
        %551 = vmatpush1.msra.mxu0 %v545
        %552 = vmatprep.subr.mxu0 0.0
        %553 = vmatpush1.msra.mxu0 0.0
        %554 = vmatprep.subr.mxu0 0.0
        %555 = vmatpush1.msra.mxu0 0.0
        %556 = vmatprep.subr.mxu0 0.0
        %557 = vmatpush1.msra.mxu0 0.0
        %558 = vmatprep.subr.mxu0 0.0
        %559 = vmatpush1.msra.mxu0 0.0
        %560 = vmatprep.subr.mxu0 0.0
        %561 = vmatpush1.msra.mxu0 0.0
        %562 = vmatprep.subr.mxu0 0.0
        %563 = vmatpush1.msra.mxu0 0.0
        %564 = vmatprep.subr.mxu0 0.0
        %565 = vmatpush1.msra.mxu0 0.0
        %566 = vmatprep.subr.mxu0 0.0
        %567 = vmatpush1.msra.mxu0 0.0
        %568 = vmatprep.subr.mxu0 0.0
        %569 = vmatpush1.msra.mxu0 0.0
        %570 = vmatprep.subr.mxu0 0.0
        %571 = vmatpush1.msra.mxu0 0.0
        %572 = vmatprep.subr.mxu0 0.0
        %573 = vmatpush1.msra.mxu0 0.0
        %574 = vmatprep.subr.mxu0 0.0
        %575 = vmatpush1.msra.mxu0 0.0
        %576 = vmatprep.subr.mxu0 0.0
        %577 = vmatpush1.msra.mxu0 0.0
        %578 = vmatprep.subr.mxu0 0.0
        %579 = vmatpush1.msra.mxu0 0.0
        %580 = vmatprep.subr.mxu0 0.0
        %581 = vmatpush1.msra.mxu0 0.0
        %582 = vmatprep.subr.mxu0 0.0
        %583 = vmatpush1.msra.mxu0 0.0
        %584 = vmatprep.subr.mxu0 0.0
        %585 = vmatpush1.msra.mxu0 0.0
        %586 = vmatprep.subr.mxu0 0.0
        %587 = vmatpush1.msra.mxu0 0.0
        %588 = vmatprep.subr.mxu0 0.0
        %589 = vmatpush1.msra.mxu0 0.0
        %590 = vmatprep.subr.mxu0 0.0
        %591 = vmatpush1.msra.mxu0 0.0
        %592 = vmatprep.subr.mxu0 0.0
        %593 = vmatpush1.msra.mxu0 0.0
        %594 = vmatprep.subr.mxu0 0.0
        %595 = vmatpush1.msra.mxu0 0.0
        %596 = vmatprep.subr.mxu0 0.0
        %597 = vmatpush1.msra.mxu0 0.0
        %598 = vmatprep.subr.mxu0 0.0
        %599 = vmatpush1.msra.mxu0 0.0
        %600 = vmatprep.subr.mxu0 0.0
        %601 = vmatpush1.msra.mxu0 0.0
        %602 = vmatprep.subr.mxu0 0.0
        %603 = vmatpush1.msra.mxu0 0.0
        %604 = vmatprep.subr.mxu0 0.0
        %605 = vmatpush1.msra.mxu0 0.0
        %606 = vmatprep.subr.mxu0 0.0
        %607 = vmatpush1.msra.mxu0 0.0
        %608 = vmatprep.subr.mxu0 0.0
        %609 = vmatpush1.msra.mxu0 0.0
        %610 = vmatprep.subr.mxu0 0.0
        %611 = vmatpush1.msra.mxu0 0.0
        %612 = vmatprep.subr.mxu0 0.0
        %613 = vmatpush1.msra.mxu0 0.0
        %614 = vmatprep.mubr.f32.mxu0 0.0
        %615 = vmatmul.mubr.f32.gmra.mrb[0].mxu0 %v542
        %v616 = vpop.f32.mrb[0].mxu0
        %v617 = vadd.f32 %v539, %v616
        %v618 = vpop.f32.mrb[0].mxu0
        %v619 = vadd.f32 %v539, %v618
        %620 = vdwg.mxu0
        %v621 = vsub.f32 0.0, %v617
        %v622 = vsub.f32 0.0, %v619
        %v623 = vmul.f32 %v621, 1.442695
        %v624 = vpow.pop %v623
        %v625 = vmul.f32 %v622, 1.442695
        %v626 = vpow.pop %v625
        %v627 = vadd.f32 %v624, 1.0
        %v628 = vadd.f32 %v626, 1.0
        %v629 = vrcp.pop %v627
        %v630 = vrcp.pop %v628
        %v632 = vmul.f32 %v629, %v363
        %v633 = vmul.f32 %v630, %v366
        %v636 = vcombine.low %v632, %v633
        %638 = vst [vmem:[%s354] sm:$0xff] %v636
        %s639 = sand.u32 %s210, 1
        %s640 = scalar_lea.sflag [#allocation4], %s639
        %s641 = sand.u32 %s210, 1
        %s642 = smul.addr %s641, 8
        %s643 = scalar_lea.vmem [#allocation7], %s642
        // Predicated region
        $region57: #{tpu_custom_call.1} parent=47 // pred_check
          %p644 = pneg %p220
        $region58: #{tpu_custom_call.1} parent=47 // pred_check_branch
          %646 = sbr.rel (%p644) target = $region60
        $region59: #{tpu_custom_call.1} parent=47 // pred_region
          %s647 = smul.u32 2, %s32
          %s649 = ssub.s32 128, 128
          %650 = vsyncadd %s640, %s649
          %s651 = smul.addr %s31, 2
          %s652 = sadd.s32 %s647, %s651
          %s653 = smul.addr %s652, 64
          %s654 = scalar_lea.hbm %s7, %s653
          %s656 = sshll.u32 %s643, 4
          %s657 = int_to_ptr.vmem [resolvable:$true] %s656
          %659 = dma.vmem_to_hbm [thread:$0]  %s657, 128, %s654, %s640
        $region60: #{tpu_custom_call.1} parent=47 // pred_fallthru
          _
      $region48: #{tpu_custom_call.1} parent=5 // pred_fallthru
        _
      %p660 = scmp.le.s32.totalorder 2, %s22
      // Predicated region
      $region61: #{tpu_custom_call.1} parent=5 // pred_check
        %p661 = pneg %p660
      $region62: #{tpu_custom_call.1} parent=5 // pred_check_branch
        %663 = sbr.rel (%p661) target = $region64
      $region63: #{tpu_custom_call.1} parent=5 // pred_region
        %s664 = ssub.s32 %s22, 2
        // Predicated region
        $region65: #{tpu_custom_call.1} parent=63 // pred_check
          %p665 = pneg %p226
        $region66: #{tpu_custom_call.1} parent=63 // pred_check_branch
          %667 = sbr.rel (%p665) target = $region68
        $region67: #{tpu_custom_call.1} parent=63 // pred_region
          %s668 = sand.u32 %s211, 1
          %s669 = scalar_lea.sflag [#allocation4], %s668
          %s670 = sand.u32 %s211, 1
          %s671 = smul.addr %s670, 8
          %s672 = scalar_lea.vmem [#allocation7], %s671
          %673 = dma.done %s669, 128
        $region68: #{tpu_custom_call.1} parent=63 // pred_fallthru
          _
      $region64: #{tpu_custom_call.1} parent=5 // pred_fallthru
        _
    $region6: #{tpu_custom_call.1} parent=1 // loop_footer
      %s26 = sadd.s32 1, %s22
    $region7: #{tpu_custom_call.1} parent=1 // loop_footer_branch
      %21 = sbr.rel target = $region3
    $region8: #{tpu_custom_call.1} parent=1 // loop_exit
      _
    %674 = vsyncpa [#allocation3], 1
    %s675 = scalar_lea.sflag [#allocation3], 1
    %676 = vsyncpa %s675, 1
    %677 = vsyncpa [#allocation6], 1
    %s678 = scalar_lea.sflag [#allocation6], 1
    %679 = vsyncpa %s678, 1
    %680 = vsyncpa [#allocation4], 1
    %s681 = scalar_lea.sflag [#allocation4], 1
    %682 = vsyncpa %s681, 1

// kernel: tpu_custom_call.1
$region0: #{tpu_custom_call.1}
  #allocation0 [shape = 'u32[]', space=smem, size = 0x4, offset = 0x4, fixed_abs, tag = 'smem constant byte address 0x4 - core index']
  #allocation1 [shape = 'u32[144,128]{1,0:T(1,128)}', space=vmem, size = 0x12000, scoped, tag = 'internal scratch']
  %s0 = inlined_call_operand.hbm [shape: f32[2,4,256], index: 0, kind: input, shape index: {}]
  %s1 = inlined_call_operand.hbm [shape: f32[2,4,256], index: 1, kind: input, shape index: {}]
  %s2 = inlined_call_operand.vmem [shape: f32[4,4], index: 2, kind: input, shape index: {}]
  %s3 = inlined_call_operand.vmem [shape: f32[4,4], index: 3, kind: input, shape index: {}]
  %s4 = inlined_call_operand.vmem [shape: f32[4,1], index: 4, kind: input, shape index: {}]
  %s5 = inlined_call_operand.vmem [shape: f32[4,4], index: 5, kind: input, shape index: {}]
  %s6 = inlined_call_operand.vmem [shape: f32[4,1], index: 6, kind: input, shape index: {}]
  %s7 = inlined_call_operand.hbm [shape: f32[2,4,256], index: 7, kind: output, shape index: {}]
  %s8 = sld [smem:[#allocation0]]
  $region69: #{tpu_custom_call.1} parent=0
    _
  %s10 = ssub.s32 1, %s8
  %s11 = scalar_select 0, %s10, %s8
  $region1: #{tpu_custom_call.1} parent=0
    #allocation2 [shape = 'u8[8192]{0}', space=vmem, size = 0x2000, scoped, tag = 'input window, operand 0']
    #allocation3 [shape = 's32[2]{0}', space=sflag, size = 0x8, scoped, tag = 'scoped memory for tpu_custom_call.1']
    #allocation4 [shape = 's32[2]{0}', space=sflag, size = 0x8, scoped, tag = 'scoped memory for tpu_custom_call.1']
    #allocation5 [shape = 'u8[8192]{0}', space=vmem, size = 0x2000, scoped, tag = 'input window, operand 1']
    #allocation6 [shape = 's32[2]{0}', space=sflag, size = 0x8, scoped, tag = 'scoped memory for tpu_custom_call.1']
    #allocation7 [shape = 'u8[8192]{0}', space=vmem, size = 0x2000, scoped, tag = 'output window, operand 0']
    %12 = vsyncpa [#allocation3], 0
    %s13 = scalar_lea.sflag [#allocation3], 1
    %14 = vsyncpa %s13, 0
    %15 = vsyncpa [#allocation6], 0
    %s16 = scalar_lea.sflag [#allocation6], 1
    %17 = vsyncpa %s16, 0
    %18 = vsyncpa [#allocation4], 0
    %s19 = scalar_lea.sflag [#allocation4], 1
    %20 = vsyncpa %s19, 0
    loop: start=0, step=1, limit=4
    $region2: #{tpu_custom_call.1} parent=1 // loop_pre_header
      _
    $region3: #{tpu_custom_call.1} parent=1 // loop_header
      %s22 = sphi 0, %s26
      %p23 = scmp.ge.s32.totalorder %s22, 4
      %s29 = sphi 0, %s41
      %s30 = sphi 0, %s37
      %s31 = sphi 0, %s29
      %s32 = sphi 0, %s30
      %s33 = sphi 0, %s31
      %s34 = sphi 0, %s32
      %s46 = sphi 0, %s48
      %s49 = sphi 0, %s46
      %s50 = sphi 0, %s49
      %s66 = sphi 0, %s50
      %s74 = sphi 0, %s76
      %s77 = sphi 0, %s74
      %s78 = sphi 0, %s77
      %s94 = sphi 0, %s78
      %s98 = sphi 0, %s98
      %s100 = sphi 0, %s98
      %s101 = sphi 0, %s100
      %s115 = sphi 0, %s101
      %s119 = sphi 0, %s119
      %s121 = sphi 0, %s119
      %s122 = sphi 0, %s121
      %s136 = sphi 0, %s122
      %s140 = sphi 0, %s140
      %s142 = sphi 0, %s140
      %s143 = sphi 0, %s142
      %s157 = sphi 0, %s143
      %s161 = sphi 0, %s161
      %s163 = sphi 0, %s161
      %s164 = sphi 0, %s163
      %s178 = sphi 0, %s164
      %s182 = sphi 0, %s182
      %s184 = sphi 0, %s182
      %s185 = sphi 0, %s184
      %s199 = sphi 0, %s185
      %s207 = sphi 0, %s209
      %s210 = sphi 0, %s207
      %s211 = sphi 0, %s210
      %s227 = sphi 0, %s211
    $region4: #{tpu_custom_call.1} parent=1 // loop_header_branch
      %25 = sbr.rel (%p23) target = $region8
    $region5: #{tpu_custom_call.1} parent=1 // loop_body
      %s27 = ssub.s32 %s22, 1
      %s28 = ssub.s32 %s22, 2
      %s35 = sadd.s32 1, %s30
      %p36 = scmp.ge.s32.totalorder %s35, 1
      %s37 = scalar_select %p36, 0, %s35
      %s38 = sadd.s32 1, %s29
      %s39 = scalar_select %p36, %s38, %s29
      %p40 = scmp.ge.s32.totalorder %s39, 2
      %s41 = scalar_select %p40, 0, %s39
      %s42 = ssub.s32 %s29, %s41
      %s43 = ssub.s32 %s30, %s37
      %s44 = sor.u32 %s42, %s43
      %p45 = scmp.eq.s32.totalorder %s44, 0
      %s47 = sadd.s32 %s46, 1
      %s48 = scalar_select %p45, %s46, %s47
      %p51 = pneg %p45
      %p52 = scmp.eq.s32.totalorder %s22, 1
      %p53 = por %p51, %p52
      %p54 = scmp.ne.s32.totalorder %s46, %s49
      %p55 = scmp.eq.s32.totalorder %s22, 0
      %p56 = por %p54, %p55
      %p57 = scmp.ne.s32.totalorder %s46, %s49
      %p58 = scmp.eq.s32.totalorder %s27, 1
      %p59 = por %p57, %p58
      %p60 = scmp.ne.s32.totalorder %s49, %s50
      %p61 = scmp.eq.s32.totalorder %s27, 0
      %p62 = por %p60, %p61
      %p63 = scmp.ne.s32.totalorder %s49, %s50
      %p64 = scmp.eq.s32.totalorder %s28, 1
      %p65 = por %p63, %p64
      %p67 = scmp.ne.s32.totalorder %s50, %s66
      %p68 = scmp.eq.s32.totalorder %s28, 0
      %p69 = por %p67, %p68
      %s70 = ssub.s32 %s29, %s41
      %s71 = ssub.s32 %s30, %s37
      %s72 = sor.u32 %s70, %s71
      %p73 = scmp.eq.s32.totalorder %s72, 0
      %s75 = sadd.s32 %s74, 1
      %s76 = scalar_select %p73, %s74, %s75
      %p79 = pneg %p73
      %p80 = scmp.eq.s32.totalorder %s22, 1
      %p81 = por %p79, %p80
      %p82 = scmp.ne.s32.totalorder %s74, %s77
      %p83 = scmp.eq.s32.totalorder %s22, 0
      %p84 = por %p82, %p83
      %p85 = scmp.ne.s32.totalorder %s74, %s77
      %p86 = scmp.eq.s32.totalorder %s27, 1
      %p87 = por %p85, %p86
      %p88 = scmp.ne.s32.totalorder %s77, %s78
      %p89 = scmp.eq.s32.totalorder %s27, 0
      %p90 = por %p88, %p89
      %p91 = scmp.ne.s32.totalorder %s77, %s78
      %p92 = scmp.eq.s32.totalorder %s28, 1
      %p93 = por %p91, %p92
      %p95 = scmp.ne.s32.totalorder %s78, %s94
      %p96 = scmp.eq.s32.totalorder %s28, 0
      %p97 = por %p95, %p96
      %s99 = sadd.s32 %s98, 1
      %p102 = scmp.eq.s32.totalorder %s22, 1
      %p103 = scmp.ne.s32.totalorder %s98, %s100
      %p104 = scmp.eq.s32.totalorder %s22, 0
      %p105 = por %p103, %p104
      %p106 = scmp.ne.s32.totalorder %s98, %s100
      %p107 = scmp.eq.s32.totalorder %s27, 1
      %p108 = por %p106, %p107
      %p109 = scmp.ne.s32.totalorder %s100, %s101
      %p110 = scmp.eq.s32.totalorder %s27, 0
      %p111 = por %p109, %p110
      %p112 = scmp.ne.s32.totalorder %s100, %s101
      %p113 = scmp.eq.s32.totalorder %s28, 1
      %p114 = por %p112, %p113
      %p116 = scmp.ne.s32.totalorder %s101, %s115
      %p117 = scmp.eq.s32.totalorder %s28, 0
      %p118 = por %p116, %p117
      %s120 = sadd.s32 %s119, 1
      %p123 = scmp.eq.s32.totalorder %s22, 1
      %p124 = scmp.ne.s32.totalorder %s119, %s121
      %p125 = scmp.eq.s32.totalorder %s22, 0
      %p126 = por %p124, %p125
      %p127 = scmp.ne.s32.totalorder %s119, %s121
      %p128 = scmp.eq.s32.totalorder %s27, 1
      %p129 = por %p127, %p128
      %p130 = scmp.ne.s32.totalorder %s121, %s122
      %p131 = scmp.eq.s32.totalorder %s27, 0
      %p132 = por %p130, %p131
      %p133 = scmp.ne.s32.totalorder %s121, %s122
      %p134 = scmp.eq.s32.totalorder %s28, 1
      %p135 = por %p133, %p134
      %p137 = scmp.ne.s32.totalorder %s122, %s136
      %p138 = scmp.eq.s32.totalorder %s28, 0
      %p139 = por %p137, %p138
      %s141 = sadd.s32 %s140, 1
      %p144 = scmp.eq.s32.totalorder %s22, 1
      %p145 = scmp.ne.s32.totalorder %s140, %s142
      %p146 = scmp.eq.s32.totalorder %s22, 0
      %p147 = por %p145, %p146
      %p148 = scmp.ne.s32.totalorder %s140, %s142
      %p149 = scmp.eq.s32.totalorder %s27, 1
      %p150 = por %p148, %p149
      %p151 = scmp.ne.s32.totalorder %s142, %s143
      %p152 = scmp.eq.s32.totalorder %s27, 0
      %p153 = por %p151, %p152
      %p154 = scmp.ne.s32.totalorder %s142, %s143
      %p155 = scmp.eq.s32.totalorder %s28, 1
      %p156 = por %p154, %p155
      %p158 = scmp.ne.s32.totalorder %s143, %s157
      %p159 = scmp.eq.s32.totalorder %s28, 0
      %p160 = por %p158, %p159
      %s162 = sadd.s32 %s161, 1
      %p165 = scmp.eq.s32.totalorder %s22, 1
      %p166 = scmp.ne.s32.totalorder %s161, %s163
      %p167 = scmp.eq.s32.totalorder %s22, 0
      %p168 = por %p166, %p167
      %p169 = scmp.ne.s32.totalorder %s161, %s163
      %p170 = scmp.eq.s32.totalorder %s27, 1
      %p171 = por %p169, %p170
      %p172 = scmp.ne.s32.totalorder %s163, %s164
      %p173 = scmp.eq.s32.totalorder %s27, 0
      %p174 = por %p172, %p173
      %p175 = scmp.ne.s32.totalorder %s163, %s164
      %p176 = scmp.eq.s32.totalorder %s28, 1
      %p177 = por %p175, %p176
      %p179 = scmp.ne.s32.totalorder %s164, %s178
      %p180 = scmp.eq.s32.totalorder %s28, 0
      %p181 = por %p179, %p180
      %s183 = sadd.s32 %s182, 1
      %p186 = scmp.eq.s32.totalorder %s22, 1
      %p187 = scmp.ne.s32.totalorder %s182, %s184
      %p188 = scmp.eq.s32.totalorder %s22, 0
      %p189 = por %p187, %p188
      %p190 = scmp.ne.s32.totalorder %s182, %s184
      %p191 = scmp.eq.s32.totalorder %s27, 1
      %p192 = por %p190, %p191
      %p193 = scmp.ne.s32.totalorder %s184, %s185
      %p194 = scmp.eq.s32.totalorder %s27, 0
      %p195 = por %p193, %p194
      %p196 = scmp.ne.s32.totalorder %s184, %s185
      %p197 = scmp.eq.s32.totalorder %s28, 1
      %p198 = por %p196, %p197
      %p200 = scmp.ne.s32.totalorder %s185, %s199
      %p201 = scmp.eq.s32.totalorder %s28, 0
      %p202 = por %p200, %p201
      %s203 = ssub.s32 %s29, %s41
      %s204 = ssub.s32 %s30, %s37
      %s205 = sor.u32 %s203, %s204
      %p206 = scmp.eq.s32.totalorder %s205, 0
      %s208 = sadd.s32 %s207, 1
      %s209 = scalar_select %p206, %s207, %s208
      %p212 = pneg %p206
      %p213 = scmp.eq.s32.totalorder %s22, 1
      %p214 = por %p212, %p213
      %p215 = scmp.ne.s32.totalorder %s207, %s210
      %p216 = scmp.eq.s32.totalorder %s22, 0
      %p217 = por %p215, %p216
      %p218 = scmp.ne.s32.totalorder %s207, %s210
      %p219 = scmp.eq.s32.totalorder %s27, 1
      %p220 = por %p218, %p219
      %p221 = scmp.ne.s32.totalorder %s210, %s211
      %p222 = scmp.eq.s32.totalorder %s27, 0
      %p223 = por %p221, %p222
      %p224 = scmp.ne.s32.totalorder %s210, %s211
      %p225 = scmp.eq.s32.totalorder %s28, 1
      %p226 = por %p224, %p225
      %p228 = scmp.ne.s32.totalorder %s211, %s227
      %p229 = scmp.eq.s32.totalorder %s28, 0
      %p230 = por %p228, %p229
      %p231 = scmp.le.s32.totalorder 1, %s22
      %p232 = scmp.lt.s32.totalorder %s22, 3
      %p233 = pnand %p231, %p232
      %p234 = pneg %p233
      // Predicated region
      $region9: #{tpu_custom_call.1} parent=5 // pred_check
        _
      $region10: #{tpu_custom_call.1} parent=5 // pred_check_branch
        %236 = sbr.rel (%p233) target = $region12
      $region11: #{tpu_custom_call.1} parent=5 // pred_region
        %s237 = ssub.s32 %s22, 1
        // Predicated region
        $region13: #{tpu_custom_call.1} parent=11 // pred_check
          %p238 = pneg %p111
        $region14: #{tpu_custom_call.1} parent=11 // pred_check_branch
          %240 = sbr.rel (%p238) target = $region16
        $region15: #{tpu_custom_call.1} parent=11 // pred_region
          _
        $region16: #{tpu_custom_call.1} parent=11 // pred_fallthru
          _
        // Predicated region
        $region17: #{tpu_custom_call.1} parent=11 // pred_check
          %p241 = pneg %p132
        $region18: #{tpu_custom_call.1} parent=11 // pred_check_branch
          %243 = sbr.rel (%p241) target = $region20
        $region19: #{tpu_custom_call.1} parent=11 // pred_region
          _
        $region20: #{tpu_custom_call.1} parent=11 // pred_fallthru
          _
        // Predicated region
        $region21: #{tpu_custom_call.1} parent=11 // pred_check
          %p244 = pneg %p153
        $region22: #{tpu_custom_call.1} parent=11 // pred_check_branch
          %246 = sbr.rel (%p244) target = $region24
        $region23: #{tpu_custom_call.1} parent=11 // pred_region
          _
        $region24: #{tpu_custom_call.1} parent=11 // pred_fallthru
          _
        // Predicated region
        $region25: #{tpu_custom_call.1} parent=11 // pred_check
          %p247 = pneg %p174
        $region26: #{tpu_custom_call.1} parent=11 // pred_check_branch
          %249 = sbr.rel (%p247) target = $region28
        $region27: #{tpu_custom_call.1} parent=11 // pred_region
          _
        $region28: #{tpu_custom_call.1} parent=11 // pred_fallthru
          _
        // Predicated region
        $region29: #{tpu_custom_call.1} parent=11 // pred_check
          %p250 = pneg %p195
        $region30: #{tpu_custom_call.1} parent=11 // pred_check_branch
          %252 = sbr.rel (%p250) target = $region32
        $region31: #{tpu_custom_call.1} parent=11 // pred_region
          _
        $region32: #{tpu_custom_call.1} parent=11 // pred_fallthru
          _
      $region12: #{tpu_custom_call.1} parent=5 // pred_fallthru
        _
      %p253 = scmp.lt.s32.totalorder %s22, 2
      // Predicated region
      $region33: #{tpu_custom_call.1} parent=5 // pred_check
        %p254 = pneg %p253
      $region34: #{tpu_custom_call.1} parent=5 // pred_check_branch
        %256 = sbr.rel (%p254) target = $region36
      $region35: #{tpu_custom_call.1} parent=5 // pred_region
        // Predicated region
        $region37: #{tpu_custom_call.1} parent=35 // pred_check
          %p257 = pneg %p56
        $region38: #{tpu_custom_call.1} parent=35 // pred_check_branch
          %259 = sbr.rel (%p257) target = $region40
        $region39: #{tpu_custom_call.1} parent=35 // pred_region
          %s260 = sand.u32 %s46, 1
          %s261 = scalar_lea.sflag [#allocation3], %s260
          %s262 = sand.u32 %s46, 1
          %s263 = smul.addr %s262, 8
          %s264 = scalar_lea.vmem [#allocation2], %s263
          %s265 = smul.u32 2, %s30
          %s267 = ssub.s32 128, 128
          %268 = vsyncadd %s261, %s267
          %s269 = smul.addr %s29, 2
          %s270 = sadd.s32 %s265, %s269
          %s271 = smul.addr %s270, 64
          %s272 = scalar_lea.hbm %s0, %s271
          %s274 = sshll.u32 %s264, 4
          %s275 = int_to_ptr.vmem [resolvable:$true] %s274
          %277 = dma.hbm_to_vmem [thread:$0]  %s272, 128, %s275, %s261
        $region40: #{tpu_custom_call.1} parent=35 // pred_fallthru
          _
        // Predicated region
        $region41: #{tpu_custom_call.1} parent=35 // pred_check
          %p278 = pneg %p84
        $region42: #{tpu_custom_call.1} parent=35 // pred_check_branch
          %280 = sbr.rel (%p278) target = $region44
        $region43: #{tpu_custom_call.1} parent=35 // pred_region
          %s281 = sand.u32 %s74, 1
          %s282 = scalar_lea.sflag [#allocation6], %s281
          %s283 = sand.u32 %s74, 1
          %s284 = smul.addr %s283, 8
          %s285 = scalar_lea.vmem [#allocation5], %s284
          %s286 = smul.u32 2, %s30
          %s288 = ssub.s32 128, 128
          %289 = vsyncadd %s282, %s288
          %s290 = smul.addr %s29, 2
          %s291 = sadd.s32 %s286, %s290
          %s292 = smul.addr %s291, 64
          %s293 = scalar_lea.hbm %s1, %s292
          %s295 = sshll.u32 %s285, 4
          %s296 = int_to_ptr.vmem [resolvable:$true] %s295
          %298 = dma.hbm_to_vmem [thread:$0]  %s293, 128, %s296, %s282
        $region44: #{tpu_custom_call.1} parent=35 // pred_fallthru
          _
      $region36: #{tpu_custom_call.1} parent=5 // pred_fallthru
        _
      %p299 = scmp.le.s32.totalorder 1, %s22
      %p300 = scmp.lt.s32.totalorder %s22, 3
      %p301 = pnand %p299, %p300
      %p302 = pneg %p301
      // Predicated region
      $region45: #{tpu_custom_call.1} parent=5 // pred_check
        _
      $region46: #{tpu_custom_call.1} parent=5 // pred_check_branch
        %304 = sbr.rel (%p301) target = $region48
      $region47: #{tpu_custom_call.1} parent=5 // pred_region
        %s305 = ssub.s32 %s22, 1
        %s306 = sand.u32 %s49, 1
        %s307 = scalar_lea.sflag [#allocation3], %s306
        %s308 = sand.u32 %s49, 1
        %s309 = smul.addr %s308, 8
        %s310 = scalar_lea.vmem [#allocation2], %s309
        // Predicated region
        $region49: #{tpu_custom_call.1} parent=47 // pred_check
          %p311 = pneg %p62
        $region50: #{tpu_custom_call.1} parent=47 // pred_check_branch
          %313 = sbr.rel (%p311) target = $region52
        $region51: #{tpu_custom_call.1} parent=47 // pred_region
          %314 = dma.done %s307, 128
        $region52: #{tpu_custom_call.1} parent=47 // pred_fallthru
          _
        %s315 = sand.u32 %s77, 1
        %s316 = scalar_lea.sflag [#allocation6], %s315
        %s317 = sand.u32 %s77, 1
        %s318 = smul.addr %s317, 8
        %s319 = scalar_lea.vmem [#allocation5], %s318
        // Predicated region
        $region53: #{tpu_custom_call.1} parent=47 // pred_check
          %p320 = pneg %p90
        $region54: #{tpu_custom_call.1} parent=47 // pred_check_branch
          %322 = sbr.rel (%p320) target = $region56
        $region55: #{tpu_custom_call.1} parent=47 // pred_region
          %323 = dma.done %s316, 128
        $region56: #{tpu_custom_call.1} parent=47 // pred_fallthru
          _
        %s324 = sand.u32 %s49, 1
        %s325 = scalar_lea.sflag [#allocation3], %s324
        %s326 = sand.u32 %s49, 1
        %s327 = smul.addr %s326, 8
        %s328 = scalar_lea.vmem [#allocation2], %s327
        %p329 = pneg %p62
        %p330 = pneg %p59
        %s331 = sand.u32 %s77, 1
        %s332 = scalar_lea.sflag [#allocation6], %s331
        %s333 = sand.u32 %s77, 1
        %s334 = smul.addr %s333, 8
        %s335 = scalar_lea.vmem [#allocation5], %s334
        %p336 = pneg %p90
        %p337 = pneg %p87
        %p338 = pneg %p111
        %p339 = pneg %p108
        %p340 = pneg %p132
        %p341 = pneg %p129
        %p342 = pneg %p153
        %p343 = pneg %p150
        %p344 = pneg %p174
        %p345 = pneg %p171
        %p346 = pneg %p195
        %p347 = pneg %p192
        %p348 = pneg %p223
        %p349 = pneg %p220
        %s350 = sand.u32 %s210, 1
        %s351 = scalar_lea.sflag [#allocation4], %s350
        %s352 = sand.u32 %s210, 1
        %s353 = smul.addr %s352, 8
        %s354 = scalar_lea.vmem [#allocation7], %s353
        %s355 = smul.u32 2, %s32
        %s356 = smul.u32 2, %s32
        %s357 = smul.u32 2, %s32
        %v358 = vld [vmem:[%s2] sm:$0xf]
        %v359 = vld [vmem:[%s3] sm:$0xf]
        %v360 = vld [vmem:[%s5] sm:$0xf]
        %v361 = vld [vmem:[%s4] sm:$0xf]
        %v362 = vld [vmem:[%s6] sm:$0xf]
        %v363 = vld [vmem:[%s319] sm:$0xff]
        %v364 = vld [vmem:[%s310] sm:$0xff]
        %v366 = vcombine.high %v363, %v363
        %vm367 = vcmask 31744
        %v369 = vsel %vm367, %v359, 0
        %vm371 = vcmask 1043456
        %v372 = vsel %vm371, %v363, 0
        %v374 = vsel %vm371, %v366, 0
        %376 = vmatprep.subr.mxu0 %v374
        %377 = vmatpush1.msra.mxu0 %v372
        %378 = vmatprep.subr.mxu0 0.0
        %379 = vmatpush1.msra.mxu0 0.0
        %380 = vmatprep.subr.mxu0 0.0
        %381 = vmatpush1.msra.mxu0 0.0
        %382 = vmatprep.subr.mxu0 0.0
        %383 = vmatpush1.msra.mxu0 0.0
        %384 = vmatprep.subr.mxu0 0.0
        %385 = vmatpush1.msra.mxu0 0.0
        %386 = vmatprep.subr.mxu0 0.0
        %387 = vmatpush1.msra.mxu0 0.0
        %388 = vmatprep.subr.mxu0 0.0
        %389 = vmatpush1.msra.mxu0 0.0
        %390 = vmatprep.subr.mxu0 0.0
        %391 = vmatpush1.msra.mxu0 0.0
        %392 = vmatprep.subr.mxu0 0.0
        %393 = vmatpush1.msra.mxu0 0.0
        %394 = vmatprep.subr.mxu0 0.0
        %395 = vmatpush1.msra.mxu0 0.0
        %396 = vmatprep.subr.mxu0 0.0
        %397 = vmatpush1.msra.mxu0 0.0
        %398 = vmatprep.subr.mxu0 0.0
        %399 = vmatpush1.msra.mxu0 0.0
        %400 = vmatprep.subr.mxu0 0.0
        %401 = vmatpush1.msra.mxu0 0.0
        %402 = vmatprep.subr.mxu0 0.0
        %403 = vmatpush1.msra.mxu0 0.0
        %404 = vmatprep.subr.mxu0 0.0
        %405 = vmatpush1.msra.mxu0 0.0
        %406 = vmatprep.subr.mxu0 0.0
        %407 = vmatpush1.msra.mxu0 0.0
        %408 = vmatprep.subr.mxu0 0.0
        %409 = vmatpush1.msra.mxu0 0.0
        %410 = vmatprep.subr.mxu0 0.0
        %411 = vmatpush1.msra.mxu0 0.0
        %412 = vmatprep.subr.mxu0 0.0
        %413 = vmatpush1.msra.mxu0 0.0
        %414 = vmatprep.subr.mxu0 0.0
        %415 = vmatpush1.msra.mxu0 0.0
        %416 = vmatprep.subr.mxu0 0.0
        %417 = vmatpush1.msra.mxu0 0.0
        %418 = vmatprep.subr.mxu0 0.0
        %419 = vmatpush1.msra.mxu0 0.0
        %420 = vmatprep.subr.mxu0 0.0
        %421 = vmatpush1.msra.mxu0 0.0
        %422 = vmatprep.subr.mxu0 0.0
        %423 = vmatpush1.msra.mxu0 0.0
        %424 = vmatprep.subr.mxu0 0.0
        %425 = vmatpush1.msra.mxu0 0.0
        %426 = vmatprep.subr.mxu0 0.0
        %427 = vmatpush1.msra.mxu0 0.0
        %428 = vmatprep.subr.mxu0 0.0
        %429 = vmatpush1.msra.mxu0 0.0
        %430 = vmatprep.subr.mxu0 0.0
        %431 = vmatpush1.msra.mxu0 0.0
        %432 = vmatprep.subr.mxu0 0.0
        %433 = vmatpush1.msra.mxu0 0.0
        %434 = vmatprep.subr.mxu0 0.0
        %435 = vmatpush1.msra.mxu0 0.0
        %436 = vmatprep.subr.mxu0 0.0
        %437 = vmatpush1.msra.mxu0 0.0
        %438 = vmatprep.subr.mxu0 0.0
        %439 = vmatpush1.msra.mxu0 0.0
        %440 = vmatprep.mubr.f32.mxu0 0.0
        %441 = vmatmul.mubr.f32.gmra.mrb[0].mxu0 %v369
        %v442 = vpop.f32.mrb[0].mxu0
        %v443 = vadd.f32 0.0, %v442
        %v444 = vpop.f32.mrb[0].mxu0
        %v445 = vadd.f32 0.0, %v444
        %446 = vdwg.mxu0
        %v448 = vcombine.high %v364, %v364
        %v450 = vsel %vm367, %v358, 0
        %v452 = vsel %vm371, %v364, 0
        %v454 = vsel %vm371, %v448, 0
        %456 = vmatprep.subr.mxu0 %v454
        %457 = vmatpush1.msra.mxu0 %v452
        %458 = vmatprep.subr.mxu0 0.0
        %459 = vmatpush1.msra.mxu0 0.0
        %460 = vmatprep.subr.mxu0 0.0
        %461 = vmatpush1.msra.mxu0 0.0
        %462 = vmatprep.subr.mxu0 0.0
        %463 = vmatpush1.msra.mxu0 0.0
        %464 = vmatprep.subr.mxu0 0.0
        %465 = vmatpush1.msra.mxu0 0.0
        %466 = vmatprep.subr.mxu0 0.0
        %467 = vmatpush1.msra.mxu0 0.0
        %468 = vmatprep.subr.mxu0 0.0
        %469 = vmatpush1.msra.mxu0 0.0
        %470 = vmatprep.subr.mxu0 0.0
        %471 = vmatpush1.msra.mxu0 0.0
        %472 = vmatprep.subr.mxu0 0.0
        %473 = vmatpush1.msra.mxu0 0.0
        %474 = vmatprep.subr.mxu0 0.0
        %475 = vmatpush1.msra.mxu0 0.0
        %476 = vmatprep.subr.mxu0 0.0
        %477 = vmatpush1.msra.mxu0 0.0
        %478 = vmatprep.subr.mxu0 0.0
        %479 = vmatpush1.msra.mxu0 0.0
        %480 = vmatprep.subr.mxu0 0.0
        %481 = vmatpush1.msra.mxu0 0.0
        %482 = vmatprep.subr.mxu0 0.0
        %483 = vmatpush1.msra.mxu0 0.0
        %484 = vmatprep.subr.mxu0 0.0
        %485 = vmatpush1.msra.mxu0 0.0
        %486 = vmatprep.subr.mxu0 0.0
        %487 = vmatpush1.msra.mxu0 0.0
        %488 = vmatprep.subr.mxu0 0.0
        %489 = vmatpush1.msra.mxu0 0.0
        %490 = vmatprep.subr.mxu0 0.0
        %491 = vmatpush1.msra.mxu0 0.0
        %492 = vmatprep.subr.mxu0 0.0
        %493 = vmatpush1.msra.mxu0 0.0
        %494 = vmatprep.subr.mxu0 0.0
        %495 = vmatpush1.msra.mxu0 0.0
        %496 = vmatprep.subr.mxu0 0.0
        %497 = vmatpush1.msra.mxu0 0.0
        %498 = vmatprep.subr.mxu0 0.0
        %499 = vmatpush1.msra.mxu0 0.0
        %500 = vmatprep.subr.mxu0 0.0
        %501 = vmatpush1.msra.mxu0 0.0
        %502 = vmatprep.subr.mxu0 0.0
        %503 = vmatpush1.msra.mxu0 0.0
        %504 = vmatprep.subr.mxu0 0.0
        %505 = vmatpush1.msra.mxu0 0.0
        %506 = vmatprep.subr.mxu0 0.0
        %507 = vmatpush1.msra.mxu0 0.0
        %508 = vmatprep.subr.mxu0 0.0
        %509 = vmatpush1.msra.mxu0 0.0
        %510 = vmatprep.subr.mxu0 0.0
        %511 = vmatpush1.msra.mxu0 0.0
        %512 = vmatprep.subr.mxu0 0.0
        %513 = vmatpush1.msra.mxu0 0.0
        %514 = vmatprep.subr.mxu0 0.0
        %515 = vmatpush1.msra.mxu0 0.0
        %516 = vmatprep.subr.mxu0 0.0
        %517 = vmatpush1.msra.mxu0 0.0
        %518 = vmatprep.subr.mxu0 0.0
        %519 = vmatpush1.msra.mxu0 0.0
        %520 = vmatprep.mubr.f32.mxu0 0.0
        %521 = vmatmul.mubr.f32.gmra.mrb[0].mxu0 %v450
        %v522 = vpop.f32.mrb[0].mxu0
        %v523 = vadd.f32 %v443, %v522
        %v524 = vpop.f32.mrb[0].mxu0
        %v525 = vadd.f32 %v445, %v524
        %526 = vdwg.mxu0
        %528 = vset.pattern.permute.xlu0 0
        %529 = vperm.xlu0 %528, %v361
        %v530 = vpop.permute.xlu0 %529
        %v532 = vadd.f32 %v523, %v530
        %v533 = vadd.f32 %v525, %v530
        %v534 = vmax.f32 %v532, 0.0
        %v535 = vmax.f32 %v533, 0.0
        %537 = vset.pattern.permute.xlu0 0
        %538 = vperm.xlu0 %537, %v362
        %v539 = vpop.permute.xlu0 %538
        %v542 = vsel %vm367, %v360, 0
        %v545 = vsel %vm371, %v534, 0
        %v548 = vsel %vm371, %v535, 0
        %550 = vmatprep.subr.mxu0 %v548
        %551 = vmatpush1.msra.mxu0 %v545
        %552 = vmatprep.subr.mxu0 0.0
        %553 = vmatpush1.msra.mxu0 0.0
        %554 = vmatprep.subr.mxu0 0.0
        %555 = vmatpush1.msra.mxu0 0.0
        %556 = vmatprep.subr.mxu0 0.0
        %557 = vmatpush1.msra.mxu0 0.0
        %558 = vmatprep.subr.mxu0 0.0
        %559 = vmatpush1.msra.mxu0 0.0
        %560 = vmatprep.subr.mxu0 0.0
        %561 = vmatpush1.msra.mxu0 0.0
        %562 = vmatprep.subr.mxu0 0.0
        %563 = vmatpush1.msra.mxu0 0.0
        %564 = vmatprep.subr.mxu0 0.0
        %565 = vmatpush1.msra.mxu0 0.0
        %566 = vmatprep.subr.mxu0 0.0
        %567 = vmatpush1.msra.mxu0 0.0
        %568 = vmatprep.subr.mxu0 0.0
        %569 = vmatpush1.msra.mxu0 0.0
        %570 = vmatprep.subr.mxu0 0.0
        %571 = vmatpush1.msra.mxu0 0.0
        %572 = vmatprep.subr.mxu0 0.0
        %573 = vmatpush1.msra.mxu0 0.0
        %574 = vmatprep.subr.mxu0 0.0
        %575 = vmatpush1.msra.mxu0 0.0
        %576 = vmatprep.subr.mxu0 0.0
        %577 = vmatpush1.msra.mxu0 0.0
        %578 = vmatprep.subr.mxu0 0.0
        %579 = vmatpush1.msra.mxu0 0.0
        %580 = vmatprep.subr.mxu0 0.0
        %581 = vmatpush1.msra.mxu0 0.0
        %582 = vmatprep.subr.mxu0 0.0
        %583 = vmatpush1.msra.mxu0 0.0
        %584 = vmatprep.subr.mxu0 0.0
        %585 = vmatpush1.msra.mxu0 0.0
        %586 = vmatprep.subr.mxu0 0.0
        %587 = vmatpush1.msra.mxu0 0.0
        %588 = vmatprep.subr.mxu0 0.0
        %589 = vmatpush1.msra.mxu0 0.0
        %590 = vmatprep.subr.mxu0 0.0
        %591 = vmatpush1.msra.mxu0 0.0
        %592 = vmatprep.subr.mxu0 0.0
        %593 = vmatpush1.msra.mxu0 0.0
        %594 = vmatprep.subr.mxu0 0.0
        %595 = vmatpush1.msra.mxu0 0.0
        %596 = vmatprep.subr.mxu0 0.0
        %597 = vmatpush1.msra.mxu0 0.0
        %598 = vmatprep.subr.mxu0 0.0
        %599 = vmatpush1.msra.mxu0 0.0
        %600 = vmatprep.subr.mxu0 0.0
        %601 = vmatpush1.msra.mxu0 0.0
        %602 = vmatprep.subr.mxu0 0.0
        %603 = vmatpush1.msra.mxu0 0.0
        %604 = vmatprep.subr.mxu0 0.0
        %605 = vmatpush1.msra.mxu0 0.0
        %606 = vmatprep.subr.mxu0 0.0
        %607 = vmatpush1.msra.mxu0 0.0
        %608 = vmatprep.subr.mxu0 0.0
        %609 = vmatpush1.msra.mxu0 0.0
        %610 = vmatprep.subr.mxu0 0.0
        %611 = vmatpush1.msra.mxu0 0.0
        %612 = vmatprep.subr.mxu0 0.0
        %613 = vmatpush1.msra.mxu0 0.0
        %614 = vmatprep.mubr.f32.mxu0 0.0
        %615 = vmatmul.mubr.f32.gmra.mrb[0].mxu0 %v542
        %v616 = vpop.f32.mrb[0].mxu0
        %v617 = vadd.f32 %v539, %v616
        %v618 = vpop.f32.mrb[0].mxu0
        %v619 = vadd.f32 %v539, %v618
        %620 = vdwg.mxu0
        %v621 = vsub.f32 0.0, %v617
        %v622 = vsub.f32 0.0, %v619
        %v623 = vmul.f32 %v621, 1.442695
        %v624 = vpow.pop %v623
        %v625 = vmul.f32 %v622, 1.442695
        %v626 = vpow.pop %v625
        %v627 = vadd.f32 %v624, 1.0
        %v628 = vadd.f32 %v626, 1.0
        %v629 = vrcp.pop %v627
        %v630 = vrcp.pop %v628
        %v632 = vmul.f32 %v629, %v363
        %v633 = vmul.f32 %v630, %v366
        %v636 = vcombine.low %v632, %v633
        %638 = vst [vmem:[%s354] sm:$0xff] %v636
        %s639 = sand.u32 %s210, 1
        %s640 = scalar_lea.sflag [#allocation4], %s639
        %s641 = sand.u32 %s210, 1
        %s642 = smul.addr %s641, 8
        %s643 = scalar_lea.vmem [#allocation7], %s642
        // Predicated region
        $region57: #{tpu_custom_call.1} parent=47 // pred_check
          %p644 = pneg %p220
        $region58: #{tpu_custom_call.1} parent=47 // pred_check_branch
          %646 = sbr.rel (%p644) target = $region60
        $region59: #{tpu_custom_call.1} parent=47 // pred_region
          %s647 = smul.u32 2, %s32
          %s649 = ssub.s32 128, 128
          %650 = vsyncadd %s640, %s649
          %s651 = smul.addr %s31, 2
          %s652 = sadd.s32 %s647, %s651
          %s653 = smul.addr %s652, 64
          %s654 = scalar_lea.hbm %s7, %s653
          %s656 = sshll.u32 %s643, 4
          %s657 = int_to_ptr.vmem [resolvable:$true] %s656
          %659 = dma.vmem_to_hbm [thread:$0]  %s657, 128, %s654, %s640
        $region60: #{tpu_custom_call.1} parent=47 // pred_fallthru
          _
      $region48: #{tpu_custom_call.1} parent=5 // pred_fallthru
        _
      %p660 = scmp.le.s32.totalorder 2, %s22
      // Predicated region
      $region61: #{tpu_custom_call.1} parent=5 // pred_check
        %p661 = pneg %p660
      $region62: #{tpu_custom_call.1} parent=5 // pred_check_branch
        %663 = sbr.rel (%p661) target = $region64
      $region63: #{tpu_custom_call.1} parent=5 // pred_region
        %s664 = ssub.s32 %s22, 2
        // Predicated region
        $region65: #{tpu_custom_call.1} parent=63 // pred_check
          %p665 = pneg %p226
        $region66: #{tpu_custom_call.1} parent=63 // pred_check_branch
          %667 = sbr.rel (%p665) target = $region68
        $region67: #{tpu_custom_call.1} parent=63 // pred_region
          %s668 = sand.u32 %s211, 1
          %s669 = scalar_lea.sflag [#allocation4], %s668
          %s670 = sand.u32 %s211, 1
          %s671 = smul.addr %s670, 8
          %s672 = scalar_lea.vmem [#allocation7], %s671
          %673 = dma.done %s669, 128
        $region68: #{tpu_custom_call.1} parent=63 // pred_fallthru
          _
      $region64: #{tpu_custom_call.1} parent=5 // pred_fallthru
        _
    $region6: #{tpu_custom_call.1} parent=1 // loop_footer
      %s26 = sadd.s32 1, %s22
    $region7: #{tpu_custom_call.1} parent=1 // loop_footer_branch
      %21 = sbr.rel target = $region3
    $region8: #{tpu_custom_call.1} parent=1 // loop_exit
      _
    %674 = vsyncpa [#allocation3], 1
    %s675 = scalar_lea.sflag [#allocation3], 1
    %676 = vsyncpa %s675, 1
    %677 = vsyncpa [#allocation6], 1
    %s678 = scalar_lea.sflag [#allocation6], 1
    %679 = vsyncpa %s678, 1
    %680 = vsyncpa [#allocation4], 1
    %s681 = scalar_lea.sflag [#allocation4], 1
    %682 = vsyncpa %s681, 1

</llo_original>
